<compile_context>
chip_gen: v6e
topology: v6e:2x2x1
jax: 0.10.0
libtpu: 0.0.40
codegen_flags: <defaults>
</compile_context>

<pallas_src>
import math

import jax
import jax.numpy as jnp
from jax.experimental import pallas as pl
from jax.experimental.pallas import tpu as pltpu

# ---- small synthetic config (consistent with the module's forward) ----
B = 2            # batch
S = 8            # sequence length
H = 32           # opt.bert_dim
NH = 2           # attention heads
HD = H // NH
FF = 4 * H       # intermediate size (= 128, lane-dense)
VOCAB = 64
TYPES = 2
NUM_CLASSES = 3  # opt.sentiment_class
OUT_PAD = 128    # lane-dense padded logits width
LN_EPS = 1e-12

# ---- packed weight slab layout (lane-aligned segment starts) ----
QKV_W = 5 * H            # 160: [q*m0 | q*m1 | k | v*m0 | v*m1]
QKV_OFF = 0
W1_OFF = 256             # (H, FF)
WC_OFF = 384             # (H, OUT_PAD) classifier (first NUM_CLASSES cols real)
WO_OFF = 512             # (H, H)
WP_OFF = 640             # (H, H)
WSLAB = 672

# ---- bias/LN slab rows (width BSLAB = 160) ----
(R_LN0G, R_LN0B, R_BQKV, R_BO, R_LN1G, R_LN1B,
 R_B1, R_B2, R_LN2G, R_LN2B, R_BP, R_BC) = range(12)
NBIAS = 12
BSLAB = QKV_W            # 160 (widest row: fused qkv bias)


def _layer_norm_ref(x, g, b):
    mu = jnp.mean(x, axis=-1, keepdims=True)
    var = jnp.mean(jnp.square(x - mu), axis=-1, keepdims=True)
    return (x - mu) * jax.lax.rsqrt(var + LN_EPS) * g + b


def _ln_fast(x, g, b):
    # E[x^2] - mu^2 variant: the two lane reductions are independent (shorter chain).
    mu = jnp.mean(x, axis=-1, keepdims=True)
    ms = jnp.mean(x * x, axis=-1, keepdims=True)
    var = ms - mu * mu
    return (x - mu) * jax.lax.rsqrt(var + LN_EPS) * g + b


# --------------------------------------------------------------------------
# Pallas kernel: single grid step over the full (B*S, H) activation slab.
# --------------------------------------------------------------------------
def asc_kernel(x_ref, w_ref, w2_ref, b_ref, out_ref):
    bias = b_ref[...]                                    # (NBIAS, BSLAB)
    row = lambda r, w: bias[r:r + 1, 0:w]                # static slices -> (1, w)

    # embedding layer norm
    x = _ln_fast(x_ref[...], row(R_LN0G, H), row(R_LN0B, H))        # (B*S, H)

    # fused QKV projection; 1/sqrt(HD) scale and per-head lane masks are folded
    # into the packed weight/bias, so no in-kernel masks or scale multiplies.
    qkv = jnp.dot(x, w_ref[:, QKV_OFF:QKV_OFF + QKV_W],
                  preferred_element_type=jnp.float32) + row(R_BQKV, QKV_W)  # (B*S, 5H)

    # --- attention core: heads stacked along sublanes, one pass per batch ---
    ctx_parts = []
    for bb in range(B):                                  # static unroll (B = 2)
        blk = qkv[bb * S:(bb + 1) * S, :]                # (S, 5H) for this batch
        q_st = jnp.concatenate([blk[:, 0:H], blk[:, H:2 * H]], axis=0)       # (2S, H)
        k_b = blk[:, 2 * H:3 * H]                                            # (S, H)
        v_st = jnp.concatenate([blk[:, 3 * H:4 * H], blk[:, 4 * H:5 * H]], axis=0)  # (2S, H)
        # TODO(synk): no attention/padding mask applied (all S tokens valid here).
        s_st = jax.lax.dot_general(q_st, k_b, (((1,), (1,)), ((), ())),
                                   preferred_element_type=jnp.float32)       # (2S, S)
        m = jnp.max(s_st, axis=-1, keepdims=True)
        e = jnp.exp(s_st - m)
        p = e * pl.reciprocal(jnp.sum(e, axis=-1, keepdims=True), approx=True)
        p_cat = jnp.concatenate([p[0:S, :], p[S:2 * S, :]], axis=1)          # (S, 2S)
        ctx_parts.append(jnp.dot(p_cat, v_st, preferred_element_type=jnp.float32))
    ctx = jnp.concatenate(ctx_parts, axis=0)                                  # (B*S, H)

    attn = jnp.dot(ctx, w_ref[:, WO_OFF:WO_OFF + H],
                   preferred_element_type=jnp.float32) + row(R_BO, H)
    x = _ln_fast(x + attn, row(R_LN1G, H), row(R_LN1B, H))

    # --- feed forward (both batches at once) ---
    h1 = jnp.dot(x, w_ref[:, W1_OFF:W1_OFF + FF],
                 preferred_element_type=jnp.float32) + row(R_B1, FF)
    # TODO(synk): HF BERT uses exact erf GELU; tanh approximation kept (matches reference).
    h1 = jax.nn.gelu(h1, approximate=True)
    ff = jnp.dot(h1, w2_ref[...], preferred_element_type=jnp.float32) + row(R_B2, H)
    x = _ln_fast(x + ff, row(R_LN2G, H), row(R_LN2B, H))

    # --- pooler + classifier for every row (keeps the store full-tile and
    #     lane-dense; wrapper picks the CLS rows).  Dropout at inference = id. ---
    # TODO(synk): training-mode dropout (random mask + 1/(1-p) scale) not emitted.
    pooled = jnp.tanh(jnp.dot(x, w_ref[:, WP_OFF:WP_OFF + H],
                              preferred_element_type=jnp.float32) + row(R_BP, H))
    logits = jnp.dot(pooled, w_ref[:, WC_OFF:WC_OFF + OUT_PAD],
                     preferred_element_type=jnp.float32) + row(R_BC, OUT_PAD)
    out_ref[...] = logits.astype(out_ref.dtype)


@jax.jit
def asc_forward(x_emb, packed):
    w_slab, w2, bias_slab = packed
    x2 = x_emb.reshape(B * S, H)                         # collapse (B, S) -> rows
    out = pl.pallas_call(
        asc_kernel,
        out_shape=jax.ShapeDtypeStruct((B * S, OUT_PAD), jnp.float32),
        grid=(1,),
        in_specs=[
            pl.BlockSpec((B * S, H), lambda i: (0, 0)),      # activations
            pl.BlockSpec((H, WSLAB), lambda i: (0, 0)),      # packed weight slab
            pl.BlockSpec((FF, H), lambda i: (0, 0)),         # ffn w2
            pl.BlockSpec((NBIAS, BSLAB), lambda i: (0, 0)),  # bias/LN slab
        ],
        out_specs=pl.BlockSpec((B * S, OUT_PAD), lambda i: (0, 0)),
        compiler_params=pltpu.CompilerParams(
            dimension_semantics=("arbitrary",)),
        cost_estimate=pl.CostEstimate(
            flops=660_000, transcendentals=3_000, bytes_accessed=130_000),
    )(x2, w_slab, w2, bias_slab)
    # CLS token of batch b is row b*S; real classes are the first NUM_CLASSES lanes.
    return out.reshape(B, S, OUT_PAD)[:, 0, :NUM_CLASSES]


# --------------------------------------------------------------------------
# Host-side parameter construction / packing and a pure-JAX reference.
# --------------------------------------------------------------------------
def init_params(key):
    ks = jax.random.split(key, 8)
    w = lambda k, shape: (0.02 * jax.random.normal(k, shape)).astype(jnp.float32)
    zeros = lambda shape: jnp.zeros(shape, jnp.float32)
    ones = lambda shape: jnp.ones(shape, jnp.float32)
    return (
        ones((1, H)), zeros((1, H)),                      # embedding LN
        w(ks[0], (H, H)), zeros((1, H)),                  # wq, bq
        w(ks[1], (H, H)), zeros((1, H)),                  # wk, bk
        w(ks[2], (H, H)), zeros((1, H)),                  # wv, bv
        w(ks[3], (H, H)), zeros((1, H)),                  # wo, bo
        ones((1, H)), zeros((1, H)),                      # attn LN
        w(ks[4], (H, FF)), zeros((1, FF)),                # ffn w1, b1
        w(ks[5], (FF, H)), zeros((1, H)),                 # ffn w2, b2
        ones((1, H)), zeros((1, H)),                      # ffn LN
        w(ks[6], (H, H)), zeros((1, H)),                  # pooler
        w(ks[7], (H, NUM_CLASSES)), zeros((1, NUM_CLASSES)),  # classifier
    )


def pack_params(p):
    (ln0_g, ln0_b, wq, bq, wk, bk, wv, bv, wo, bo, ln1_g, ln1_b,
     w1, b1, w2, b2, ln2_g, ln2_b, wp, bp, wc, bc) = p
    scale = 1.0 / math.sqrt(HD)
    m0 = (jnp.arange(H) < HD).astype(jnp.float32)[None, :]        # head0 lanes
    m1 = 1.0 - m0                                                 # head1 lanes
    wq_s, bq_s = wq * scale, bq * scale
    # fused QKV weight/bias (scale + head masks folded in at pack time)
    w_qkv = jnp.concatenate([wq_s * m0, wq_s * m1, wk, wv * m0, wv * m1], axis=1)
    b_qkv = jnp.concatenate([bq_s * m0, bq_s * m1, bk, bv * m0, bv * m1], axis=1)

    w_slab = jnp.zeros((H, WSLAB), jnp.float32)
    w_slab = w_slab.at[:, QKV_OFF:QKV_OFF + QKV_W].set(w_qkv)
    w_slab = w_slab.at[:, W1_OFF:W1_OFF + FF].set(w1)
    w_slab = w_slab.at[:, WC_OFF:WC_OFF + NUM_CLASSES].set(wc)    # padded to 128
    w_slab = w_slab.at[:, WO_OFF:WO_OFF + H].set(wo)
    w_slab = w_slab.at[:, WP_OFF:WP_OFF + H].set(wp)

    bias = jnp.zeros((NBIAS, BSLAB), jnp.float32)
    put = lambda buf, r, v: buf.at[r:r + 1, :v.shape[1]].set(v)
    bias = put(bias, R_LN0G, ln0_g); bias = put(bias, R_LN0B, ln0_b)
    bias = put(bias, R_BQKV, b_qkv); bias = put(bias, R_BO, bo)
    bias = put(bias, R_LN1G, ln1_g); bias = put(bias, R_LN1B, ln1_b)
    bias = put(bias, R_B1, b1);      bias = put(bias, R_B2, b2)
    bias = put(bias, R_LN2G, ln2_g); bias = put(bias, R_LN2B, ln2_b)
    bias = put(bias, R_BP, bp);      bias = put(bias, R_BC, bc)
    return (w_slab, w2, bias)


def reference_forward(x_emb, p):
    """Pure-JAX reference with the original per-head slicing formulation."""
    (ln0_g, ln0_b, wq, bq, wk, bk, wv, bv, wo, bo, ln1_g, ln1_b,
     w1, b1, w2, b2, ln2_g, ln2_b, wp, bp, wc, bc) = p
    g3 = lambda v: v.reshape(1, 1, -1)
    x = _layer_norm_ref(x_emb, g3(ln0_g), g3(ln0_b))
    q = jnp.einsum('bsh,hd->bsd', x, wq) + g3(bq)
    k = jnp.einsum('bsh,hd->bsd', x, wk) + g3(bk)
    v = jnp.einsum('bsh,hd->bsd', x, wv) + g3(bv)
    scale = 1.0 / math.sqrt(HD)
    heads = []
    for h in range(NH):
        sl = slice(h * HD, (h + 1) * HD)
        s = jnp.einsum('bsd,btd->bst', q[..., sl], k[..., sl]) * scale
        probs = jax.nn.softmax(s, axis=-1)
        heads.append(jnp.einsum('bst,btd->bsd', probs, v[..., sl]))
    ctx = jnp.concatenate(heads, axis=-1)
    attn_out = jnp.einsum('bsd,dh->bsh', ctx, wo) + g3(bo)
    x = _layer_norm_ref(x + attn_out, g3(ln1_g), g3(ln1_b))
    hdn = jax.nn.gelu(jnp.einsum('bsh,hf->bsf', x, w1) + g3(b1), approximate=True)
    ff = jnp.einsum('bsf,fh->bsh', hdn, w2) + g3(b2)
    x = _layer_norm_ref(x + ff, g3(ln2_g), g3(ln2_b))
    pooled = jnp.tanh(x[:, 0, :] @ wp + bp)
    return pooled @ wc + bc


if __name__ == "__main__":
    key = jax.random.PRNGKey(0)
    k_emb, k_par, k_ids = jax.random.split(key, 3)

    # embedding tables (gather done as plain-JAX glue)
    ke = jax.random.split(k_emb, 3)
    word_emb = 0.02 * jax.random.normal(ke[0], (VOCAB, H), jnp.float32)
    pos_emb = 0.02 * jax.random.normal(ke[1], (S, H), jnp.float32)
    type_emb = 0.02 * jax.random.normal(ke[2], (TYPES, H), jnp.float32)

    params = init_params(k_par)
    packed = pack_params(params)

    # module inputs: (text_bert_indices, bert_segments_ids)
    text_bert_indices = jax.random.randint(k_ids, (B, S), 0, VOCAB)
    bert_segments_ids = jnp.concatenate(
        [jnp.zeros((B, S // 2), jnp.int32), jnp.ones((B, S - S // 2), jnp.int32)],
        axis=1)

    x_emb = (word_emb[text_bert_indices]
             + pos_emb[None, :, :]
             + type_emb[bert_segments_ids]).astype(jnp.float32)

    out = jax.block_until_ready(asc_forward(x_emb, packed))
    ref = reference_forward(x_emb, params)
    assert out.shape == (B, NUM_CLASSES)
    assert jnp.allclose(out, ref, atol=1e-4, rtol=1e-4)
    print("KERNEL_OK")
</pallas_src>

<mosaic_0001>
module attributes {stable_mosaic.version = 11 : i64} {
  func.func @asc_kernel(%arg0: i32, %arg1: memref<16x32xf32, #tpu.memory_space<vmem>>, %arg2: memref<32x672xf32, #tpu.memory_space<vmem>>, %arg3: memref<128x32xf32, #tpu.memory_space<vmem>>, %arg4: memref<12x160xf32, #tpu.memory_space<vmem>>, %arg5: memref<16x128xf32, #tpu.memory_space<vmem>>) attributes {dimension_semantics = [#tpu.dimension_semantics<arbitrary>], iteration_bounds = array<i64: 1>, scalar_prefetch = 0 : i64, scratch_operands = 0 : i64, tpu.core_type = #tpu.core_type<tc>, window_params = [{pipeline_mode = #tpu.pipeline_mode<synchronous>, transform_indices = @transform_0, window_bounds = array<i64: 16, 32>}, {pipeline_mode = #tpu.pipeline_mode<synchronous>, transform_indices = @transform_1, window_bounds = array<i64: 32, 672>}, {pipeline_mode = #tpu.pipeline_mode<synchronous>, transform_indices = @transform_2, window_bounds = array<i64: 128, 32>}, {pipeline_mode = #tpu.pipeline_mode<synchronous>, transform_indices = @transform_3, window_bounds = array<i64: 12, 160>}, {pipeline_mode = #tpu.pipeline_mode<synchronous>, transform_indices = @transform_4, window_bounds = array<i64: 16, 128>}]} {
    %c0 = arith.constant 0 : index
    %c0_0 = arith.constant 0 : index
    %0 = vector.load %arg4[%c0, %c0_0] : memref<12x160xf32, #tpu.memory_space<vmem>>, vector<12x160xf32>
    %c0_1 = arith.constant 0 : index
    %c0_2 = arith.constant 0 : index
    %1 = vector.load %arg1[%c0_1, %c0_2] : memref<16x32xf32, #tpu.memory_space<vmem>>, vector<16x32xf32>
    %2 = vector.extract_strided_slice %0 {offsets = [0, 0], sizes = [1, 32], strides = [1, 1]} : vector<12x160xf32> to vector<1x32xf32>
    %3 = vector.extract_strided_slice %0 {offsets = [1, 0], sizes = [1, 32], strides = [1, 1]} : vector<12x160xf32> to vector<1x32xf32>
    %cst = arith.constant dense<0.000000e+00> : vector<16xf32>
    %4 = vector.multi_reduction <add>, %1, %cst [1] : vector<16x32xf32> to vector<16xf32>
    %5 = vector.shape_cast %4 : vector<16xf32> to vector<16x1xf32>
    %cst_3 = arith.constant 3.200000e+01 : f32
    %6 = vector.broadcast %cst_3 : f32 to vector<16x1xf32>
    %7 = arith.divf %5, %6 : vector<16x1xf32>
    %8 = arith.mulf %1, %1 : vector<16x32xf32>
    %cst_4 = arith.constant dense<0.000000e+00> : vector<16xf32>
    %9 = vector.multi_reduction <add>, %8, %cst_4 [1] : vector<16x32xf32> to vector<16xf32>
    %10 = vector.shape_cast %9 : vector<16xf32> to vector<16x1xf32>
    %cst_5 = arith.constant 3.200000e+01 : f32
    %11 = vector.broadcast %cst_5 : f32 to vector<16x1xf32>
    %12 = arith.divf %10, %11 : vector<16x1xf32>
    %13 = arith.mulf %7, %7 : vector<16x1xf32>
    %14 = arith.subf %12, %13 : vector<16x1xf32>
    %15 = vector.broadcast %7 : vector<16x1xf32> to vector<16x32xf32>
    %16 = arith.subf %1, %15 : vector<16x32xf32>
    %cst_6 = arith.constant 9.99999996E-13 : f32
    %17 = vector.broadcast %cst_6 : f32 to vector<16x1xf32>
    %18 = arith.addf %14, %17 : vector<16x1xf32>
    %19 = math.rsqrt %18 : vector<16x1xf32>
    %20 = vector.broadcast %19 : vector<16x1xf32> to vector<16x32xf32>
    %21 = arith.mulf %16, %20 : vector<16x32xf32>
    %22 = vector.broadcast %2 : vector<1x32xf32> to vector<16x32xf32>
    %23 = arith.mulf %21, %22 : vector<16x32xf32>
    %24 = vector.broadcast %3 : vector<1x32xf32> to vector<16x32xf32>
    %25 = arith.addf %23, %24 : vector<16x32xf32>
    %c0_7 = arith.constant 0 : index
    %c0_8 = arith.constant 0 : index
    %26 = vector.load %arg2[%c0_7, %c0_8] : memref<32x672xf32, #tpu.memory_space<vmem>>, vector<32x160xf32>
    %cst_9 = arith.constant dense<0.000000e+00> : vector<16x160xf32>
    %27 = tpu.matmul %25, %26, %cst_9 {dimension_numbers = #tpu.dot_dimension_numbers<[1], [0], [0], [1], [0, 0, 1, 1], [], []>} : vector<16x32xf32>, vector<32x160xf32>, vector<16x160xf32> -> vector<16x160xf32>
    %28 = vector.extract_strided_slice %0 {offsets = [2, 0], sizes = [1, 160], strides = [1, 1]} : vector<12x160xf32> to vector<1x160xf32>
    %29 = vector.broadcast %28 : vector<1x160xf32> to vector<16x160xf32>
    %30 = arith.addf %27, %29 : vector<16x160xf32>
    %31 = vector.extract_strided_slice %30 {offsets = [0, 0], sizes = [8, 160], strides = [1, 1]} : vector<16x160xf32> to vector<8x160xf32>
    %32 = vector.extract_strided_slice %31 {offsets = [0, 0], sizes = [8, 32], strides = [1, 1]} : vector<8x160xf32> to vector<8x32xf32>
    %33 = vector.extract_strided_slice %31 {offsets = [0, 32], sizes = [8, 32], strides = [1, 1]} : vector<8x160xf32> to vector<8x32xf32>
    %34 = tpu.concatenate %32, %33 in 0 : vector<8x32xf32>, vector<8x32xf32> -> vector<16x32xf32>
    %35 = vector.extract_strided_slice %31 {offsets = [0, 64], sizes = [8, 32], strides = [1, 1]} : vector<8x160xf32> to vector<8x32xf32>
    %36 = vector.extract_strided_slice %31 {offsets = [0, 96], sizes = [8, 32], strides = [1, 1]} : vector<8x160xf32> to vector<8x32xf32>
    %37 = vector.extract_strided_slice %31 {offsets = [0, 128], sizes = [8, 32], strides = [1, 1]} : vector<8x160xf32> to vector<8x32xf32>
    %38 = tpu.concatenate %36, %37 in 0 : vector<8x32xf32>, vector<8x32xf32> -> vector<16x32xf32>
    %cst_10 = arith.constant dense<0.000000e+00> : vector<16x8xf32>
    %39 = tpu.matmul %34, %35, %cst_10 {dimension_numbers = #tpu.dot_dimension_numbers<[1], [1], [0], [0], [0, 0, 1, 0], [], []>} : vector<16x32xf32>, vector<8x32xf32>, vector<16x8xf32> -> vector<16x8xf32>
    %cst_11 = arith.constant dense<0xFF800000> : vector<16xf32>
    %40 = vector.multi_reduction <maximumf>, %39, %cst_11 [1] : vector<16x8xf32> to vector<16xf32>
    %41 = vector.shape_cast %40 : vector<16xf32> to vector<16x1xf32>
    %42 = vector.broadcast %41 : vector<16x1xf32> to vector<16x8xf32>
    %43 = arith.subf %39, %42 : vector<16x8xf32>
    %44 = math.exp %43 : vector<16x8xf32>
    %cst_12 = arith.constant dense<0.000000e+00> : vector<16xf32>
    %45 = vector.multi_reduction <add>, %44, %cst_12 [1] : vector<16x8xf32> to vector<16xf32>
    %46 = vector.shape_cast %45 : vector<16xf32> to vector<16x1xf32>
    %47 = tpu.reciprocal %46 {approx = true} : vector<16x1xf32> -> vector<16x1xf32>
    %48 = vector.broadcast %47 : vector<16x1xf32> to vector<16x8xf32>
    %49 = arith.mulf %44, %48 : vector<16x8xf32>
    %50 = vector.extract_strided_slice %49 {offsets = [0, 0], sizes = [8, 8], strides = [1, 1]} : vector<16x8xf32> to vector<8x8xf32>
    %51 = vector.extract_strided_slice %49 {offsets = [8, 0], sizes = [8, 8], strides = [1, 1]} : vector<16x8xf32> to vector<8x8xf32>
    %52 = tpu.concatenate %50, %51 in 1 : vector<8x8xf32>, vector<8x8xf32> -> vector<8x16xf32>
    %cst_13 = arith.constant dense<0.000000e+00> : vector<8x32xf32>
    %53 = tpu.matmul %52, %38, %cst_13 {dimension_numbers = #tpu.dot_dimension_numbers<[1], [0], [0], [1], [0, 0, 1, 1], [], []>} : vector<8x16xf32>, vector<16x32xf32>, vector<8x32xf32> -> vector<8x32xf32>
    %54 = vector.extract_strided_slice %30 {offsets = [8, 0], sizes = [8, 160], strides = [1, 1]} : vector<16x160xf32> to vector<8x160xf32>
    %55 = vector.extract_strided_slice %54 {offsets = [0, 0], sizes = [8, 32], strides = [1, 1]} : vector<8x160xf32> to vector<8x32xf32>
    %56 = vector.extract_strided_slice %54 {offsets = [0, 32], sizes = [8, 32], strides = [1, 1]} : vector<8x160xf32> to vector<8x32xf32>
    %57 = tpu.concatenate %55, %56 in 0 : vector<8x32xf32>, vector<8x32xf32> -> vector<16x32xf32>
    %58 = vector.extract_strided_slice %54 {offsets = [0, 64], sizes = [8, 32], strides = [1, 1]} : vector<8x160xf32> to vector<8x32xf32>
    %59 = vector.extract_strided_slice %54 {offsets = [0, 96], sizes = [8, 32], strides = [1, 1]} : vector<8x160xf32> to vector<8x32xf32>
    %60 = vector.extract_strided_slice %54 {offsets = [0, 128], sizes = [8, 32], strides = [1, 1]} : vector<8x160xf32> to vector<8x32xf32>
    %61 = tpu.concatenate %59, %60 in 0 : vector<8x32xf32>, vector<8x32xf32> -> vector<16x32xf32>
    %cst_14 = arith.constant dense<0.000000e+00> : vector<16x8xf32>
    %62 = tpu.matmul %57, %58, %cst_14 {dimension_numbers = #tpu.dot_dimension_numbers<[1], [1], [0], [0], [0, 0, 1, 0], [], []>} : vector<16x32xf32>, vector<8x32xf32>, vector<16x8xf32> -> vector<16x8xf32>
    %cst_15 = arith.constant dense<0xFF800000> : vector<16xf32>
    %63 = vector.multi_reduction <maximumf>, %62, %cst_15 [1] : vector<16x8xf32> to vector<16xf32>
    %64 = vector.shape_cast %63 : vector<16xf32> to vector<16x1xf32>
    %65 = vector.broadcast %64 : vector<16x1xf32> to vector<16x8xf32>
    %66 = arith.subf %62, %65 : vector<16x8xf32>
    %67 = math.exp %66 : vector<16x8xf32>
    %cst_16 = arith.constant dense<0.000000e+00> : vector<16xf32>
    %68 = vector.multi_reduction <add>, %67, %cst_16 [1] : vector<16x8xf32> to vector<16xf32>
    %69 = vector.shape_cast %68 : vector<16xf32> to vector<16x1xf32>
    %70 = tpu.reciprocal %69 {approx = true} : vector<16x1xf32> -> vector<16x1xf32>
    %71 = vector.broadcast %70 : vector<16x1xf32> to vector<16x8xf32>
    %72 = arith.mulf %67, %71 : vector<16x8xf32>
    %73 = vector.extract_strided_slice %72 {offsets = [0, 0], sizes = [8, 8], strides = [1, 1]} : vector<16x8xf32> to vector<8x8xf32>
    %74 = vector.extract_strided_slice %72 {offsets = [8, 0], sizes = [8, 8], strides = [1, 1]} : vector<16x8xf32> to vector<8x8xf32>
    %75 = tpu.concatenate %73, %74 in 1 : vector<8x8xf32>, vector<8x8xf32> -> vector<8x16xf32>
    %cst_17 = arith.constant dense<0.000000e+00> : vector<8x32xf32>
    %76 = tpu.matmul %75, %61, %cst_17 {dimension_numbers = #tpu.dot_dimension_numbers<[1], [0], [0], [1], [0, 0, 1, 1], [], []>} : vector<8x16xf32>, vector<16x32xf32>, vector<8x32xf32> -> vector<8x32xf32>
    %77 = tpu.concatenate %53, %76 in 0 : vector<8x32xf32>, vector<8x32xf32> -> vector<16x32xf32>
    %c0_18 = arith.constant 0 : index
    %c512 = arith.constant 512 : index
    %78 = vector.load %arg2[%c0_18, %c512] : memref<32x672xf32, #tpu.memory_space<vmem>>, vector<32x32xf32>
    %cst_19 = arith.constant dense<0.000000e+00> : vector<16x32xf32>
    %79 = tpu.matmul %77, %78, %cst_19 {dimension_numbers = #tpu.dot_dimension_numbers<[1], [0], [0], [1], [0, 0, 1, 1], [], []>} : vector<16x32xf32>, vector<32x32xf32>, vector<16x32xf32> -> vector<16x32xf32>
    %80 = vector.extract_strided_slice %0 {offsets = [3, 0], sizes = [1, 32], strides = [1, 1]} : vector<12x160xf32> to vector<1x32xf32>
    %81 = vector.broadcast %80 : vector<1x32xf32> to vector<16x32xf32>
    %82 = arith.addf %79, %81 : vector<16x32xf32>
    %83 = arith.addf %25, %82 : vector<16x32xf32>
    %84 = vector.extract_strided_slice %0 {offsets = [4, 0], sizes = [1, 32], strides = [1, 1]} : vector<12x160xf32> to vector<1x32xf32>
    %85 = vector.extract_strided_slice %0 {offsets = [5, 0], sizes = [1, 32], strides = [1, 1]} : vector<12x160xf32> to vector<1x32xf32>
    %cst_20 = arith.constant dense<0.000000e+00> : vector<16xf32>
    %86 = vector.multi_reduction <add>, %83, %cst_20 [1] : vector<16x32xf32> to vector<16xf32>
    %87 = vector.shape_cast %86 : vector<16xf32> to vector<16x1xf32>
    %cst_21 = arith.constant 3.200000e+01 : f32
    %88 = vector.broadcast %cst_21 : f32 to vector<16x1xf32>
    %89 = arith.divf %87, %88 : vector<16x1xf32>
    %90 = arith.mulf %83, %83 : vector<16x32xf32>
    %cst_22 = arith.constant dense<0.000000e+00> : vector<16xf32>
    %91 = vector.multi_reduction <add>, %90, %cst_22 [1] : vector<16x32xf32> to vector<16xf32>
    %92 = vector.shape_cast %91 : vector<16xf32> to vector<16x1xf32>
    %cst_23 = arith.constant 3.200000e+01 : f32
    %93 = vector.broadcast %cst_23 : f32 to vector<16x1xf32>
    %94 = arith.divf %92, %93 : vector<16x1xf32>
    %95 = arith.mulf %89, %89 : vector<16x1xf32>
    %96 = arith.subf %94, %95 : vector<16x1xf32>
    %97 = vector.broadcast %89 : vector<16x1xf32> to vector<16x32xf32>
    %98 = arith.subf %83, %97 : vector<16x32xf32>
    %cst_24 = arith.constant 9.99999996E-13 : f32
    %99 = vector.broadcast %cst_24 : f32 to vector<16x1xf32>
    %100 = arith.addf %96, %99 : vector<16x1xf32>
    %101 = math.rsqrt %100 : vector<16x1xf32>
    %102 = vector.broadcast %101 : vector<16x1xf32> to vector<16x32xf32>
    %103 = arith.mulf %98, %102 : vector<16x32xf32>
    %104 = vector.broadcast %84 : vector<1x32xf32> to vector<16x32xf32>
    %105 = arith.mulf %103, %104 : vector<16x32xf32>
    %106 = vector.broadcast %85 : vector<1x32xf32> to vector<16x32xf32>
    %107 = arith.addf %105, %106 : vector<16x32xf32>
    %c0_25 = arith.constant 0 : index
    %c256 = arith.constant 256 : index
    %108 = vector.load %arg2[%c0_25, %c256] : memref<32x672xf32, #tpu.memory_space<vmem>>, vector<32x128xf32>
    %cst_26 = arith.constant dense<0.000000e+00> : vector<16x128xf32>
    %109 = tpu.matmul %107, %108, %cst_26 {dimension_numbers = #tpu.dot_dimension_numbers<[1], [0], [0], [1], [0, 0, 1, 1], [], []>} : vector<16x32xf32>, vector<32x128xf32>, vector<16x128xf32> -> vector<16x128xf32>
    %110 = vector.extract_strided_slice %0 {offsets = [6, 0], sizes = [1, 128], strides = [1, 1]} : vector<12x160xf32> to vector<1x128xf32>
    %111 = vector.broadcast %110 : vector<1x128xf32> to vector<16x128xf32>
    %112 = arith.addf %109, %111 : vector<16x128xf32>
    %113 = arith.mulf %112, %112 : vector<16x128xf32>
    %114 = arith.mulf %112, %113 : vector<16x128xf32>
    %cst_27 = arith.constant 4.471500e-02 : f32
    %115 = vector.broadcast %cst_27 : f32 to vector<16x128xf32>
    %116 = arith.mulf %115, %114 : vector<16x128xf32>
    %117 = arith.addf %112, %116 : vector<16x128xf32>
    %cst_28 = arith.constant 0.797884583 : f32
    %118 = vector.broadcast %cst_28 : f32 to vector<16x128xf32>
    %119 = arith.mulf %118, %117 : vector<16x128xf32>
    %120 = math.tanh %119 : vector<16x128xf32>
    %cst_29 = arith.constant 1.000000e+00 : f32
    %121 = vector.broadcast %cst_29 : f32 to vector<16x128xf32>
    %122 = arith.addf %121, %120 : vector<16x128xf32>
    %cst_30 = arith.constant 5.000000e-01 : f32
    %123 = vector.broadcast %cst_30 : f32 to vector<16x128xf32>
    %124 = arith.mulf %123, %122 : vector<16x128xf32>
    %125 = arith.mulf %112, %124 : vector<16x128xf32>
    %c0_31 = arith.constant 0 : index
    %c0_32 = arith.constant 0 : index
    %126 = vector.load %arg3[%c0_31, %c0_32] : memref<128x32xf32, #tpu.memory_space<vmem>>, vector<128x32xf32>
    %cst_33 = arith.constant dense<0.000000e+00> : vector<16x32xf32>
    %127 = tpu.matmul %125, %126, %cst_33 {dimension_numbers = #tpu.dot_dimension_numbers<[1], [0], [0], [1], [0, 0, 1, 1], [], []>} : vector<16x128xf32>, vector<128x32xf32>, vector<16x32xf32> -> vector<16x32xf32>
    %128 = vector.extract_strided_slice %0 {offsets = [7, 0], sizes = [1, 32], strides = [1, 1]} : vector<12x160xf32> to vector<1x32xf32>
    %129 = vector.broadcast %128 : vector<1x32xf32> to vector<16x32xf32>
    %130 = arith.addf %127, %129 : vector<16x32xf32>
    %131 = arith.addf %107, %130 : vector<16x32xf32>
    %132 = vector.extract_strided_slice %0 {offsets = [8, 0], sizes = [1, 32], strides = [1, 1]} : vector<12x160xf32> to vector<1x32xf32>
    %133 = vector.extract_strided_slice %0 {offsets = [9, 0], sizes = [1, 32], strides = [1, 1]} : vector<12x160xf32> to vector<1x32xf32>
    %cst_34 = arith.constant dense<0.000000e+00> : vector<16xf32>
    %134 = vector.multi_reduction <add>, %131, %cst_34 [1] : vector<16x32xf32> to vector<16xf32>
    %135 = vector.shape_cast %134 : vector<16xf32> to vector<16x1xf32>
    %cst_35 = arith.constant 3.200000e+01 : f32
    %136 = vector.broadcast %cst_35 : f32 to vector<16x1xf32>
    %137 = arith.divf %135, %136 : vector<16x1xf32>
    %138 = arith.mulf %131, %131 : vector<16x32xf32>
    %cst_36 = arith.constant dense<0.000000e+00> : vector<16xf32>
    %139 = vector.multi_reduction <add>, %138, %cst_36 [1] : vector<16x32xf32> to vector<16xf32>
    %140 = vector.shape_cast %139 : vector<16xf32> to vector<16x1xf32>
    %cst_37 = arith.constant 3.200000e+01 : f32
    %141 = vector.broadcast %cst_37 : f32 to vector<16x1xf32>
    %142 = arith.divf %140, %141 : vector<16x1xf32>
    %143 = arith.mulf %137, %137 : vector<16x1xf32>
    %144 = arith.subf %142, %143 : vector<16x1xf32>
    %145 = vector.broadcast %137 : vector<16x1xf32> to vector<16x32xf32>
    %146 = arith.subf %131, %145 : vector<16x32xf32>
    %cst_38 = arith.constant 9.99999996E-13 : f32
    %147 = vector.broadcast %cst_38 : f32 to vector<16x1xf32>
    %148 = arith.addf %144, %147 : vector<16x1xf32>
    %149 = math.rsqrt %148 : vector<16x1xf32>
    %150 = vector.broadcast %149 : vector<16x1xf32> to vector<16x32xf32>
    %151 = arith.mulf %146, %150 : vector<16x32xf32>
    %152 = vector.broadcast %132 : vector<1x32xf32> to vector<16x32xf32>
    %153 = arith.mulf %151, %152 : vector<16x32xf32>
    %154 = vector.broadcast %133 : vector<1x32xf32> to vector<16x32xf32>
    %155 = arith.addf %153, %154 : vector<16x32xf32>
    %c0_39 = arith.constant 0 : index
    %c640 = arith.constant 640 : index
    %156 = vector.load %arg2[%c0_39, %c640] : memref<32x672xf32, #tpu.memory_space<vmem>>, vector<32x32xf32>
    %cst_40 = arith.constant dense<0.000000e+00> : vector<16x32xf32>
    %157 = tpu.matmul %155, %156, %cst_40 {dimension_numbers = #tpu.dot_dimension_numbers<[1], [0], [0], [1], [0, 0, 1, 1], [], []>} : vector<16x32xf32>, vector<32x32xf32>, vector<16x32xf32> -> vector<16x32xf32>
    %158 = vector.extract_strided_slice %0 {offsets = [10, 0], sizes = [1, 32], strides = [1, 1]} : vector<12x160xf32> to vector<1x32xf32>
    %159 = vector.broadcast %158 : vector<1x32xf32> to vector<16x32xf32>
    %160 = arith.addf %157, %159 : vector<16x32xf32>
    %161 = math.tanh %160 : vector<16x32xf32>
    %c0_41 = arith.constant 0 : index
    %c384 = arith.constant 384 : index
    %162 = vector.load %arg2[%c0_41, %c384] : memref<32x672xf32, #tpu.memory_space<vmem>>, vector<32x128xf32>
    %cst_42 = arith.constant dense<0.000000e+00> : vector<16x128xf32>
    %163 = tpu.matmul %161, %162, %cst_42 {dimension_numbers = #tpu.dot_dimension_numbers<[1], [0], [0], [1], [0, 0, 1, 1], [], []>} : vector<16x32xf32>, vector<32x128xf32>, vector<16x128xf32> -> vector<16x128xf32>
    %164 = vector.extract_strided_slice %0 {offsets = [11, 0], sizes = [1, 128], strides = [1, 1]} : vector<12x160xf32> to vector<1x128xf32>
    %165 = vector.broadcast %164 : vector<1x128xf32> to vector<16x128xf32>
    %166 = arith.addf %163, %165 : vector<16x128xf32>
    %c0_43 = arith.constant 0 : index
    %c0_44 = arith.constant 0 : index
    %167 = vector.load %arg5[%c0_43, %c0_44] : memref<16x128xf32, #tpu.memory_space<vmem>>, vector<16x128xf32>
    tpu.vector_store %arg5[%c0_43, %c0_44], %166 {strides = array<i32>} : memref<16x128xf32, #tpu.memory_space<vmem>>, vector<16x128xf32>,
    return
  }
  func.func @transform_0(%arg0: i32) -> (i32, i32) {
    %c0_i32 = arith.constant 0 : i32
    %c0_i32_0 = arith.constant 0 : i32
    %c0_i32_1 = arith.constant 0 : i32
    return %c0_i32, %c0_i32_0 : i32, i32
  }
  func.func @transform_1(%arg0: i32) -> (i32, i32) {
    %c0_i32 = arith.constant 0 : i32
    %c0_i32_0 = arith.constant 0 : i32
    %c0_i32_1 = arith.constant 0 : i32
    return %c0_i32, %c0_i32_0 : i32, i32
  }
  func.func @transform_2(%arg0: i32) -> (i32, i32) {
    %c0_i32 = arith.constant 0 : i32
    %c0_i32_0 = arith.constant 0 : i32
    %c0_i32_1 = arith.constant 0 : i32
    return %c0_i32, %c0_i32_0 : i32, i32
  }
  func.func @transform_3(%arg0: i32) -> (i32, i32) {
    %c0_i32 = arith.constant 0 : i32
    %c0_i32_0 = arith.constant 0 : i32
    %c0_i32_1 = arith.constant 0 : i32
    return %c0_i32, %c0_i32_0 : i32, i32
  }
  func.func @transform_4(%arg0: i32) -> (i32, i32) {
    %c0_i32 = arith.constant 0 : i32
    %c0_i32_0 = arith.constant 0 : i32
    %c0_i32_1 = arith.constant 0 : i32
    return %c0_i32, %c0_i32_0 : i32, i32
  }
}

</mosaic_0001>

<llo_original>
// kernel: asc_forward.1
$region0: #{asc_forward.1}
  #allocation0 [shape = 'u32[]', space=smem, size = 0x4, offset = 0x4, fixed_abs, tag = 'smem constant byte address 0x4 - core index']
  #allocation1 [shape = 'u32[144,128]{1,0:T(1,128)}', space=vmem, size = 0x12000, scoped, tag = 'internal scratch']
  %s0 = inlined_call_operand.vmem [shape: f32[16,32], index: 0, kind: input, shape index: {}]
  %s1 = inlined_call_operand.hbm [shape: f32[32,672], index: 1, kind: input, shape index: {}]
  %s2 = inlined_call_operand.vmem [shape: f32[128,32], index: 2, kind: input, shape index: {}]
  %s3 = inlined_call_operand.vmem [shape: f32[12,160], index: 3, kind: input, shape index: {}]
  %s4 = inlined_call_operand.vmem [shape: f32[16,128], index: 4, kind: output, shape index: {}]
  %s5 = sld [smem:[#allocation0]]
  $region30: #{asc_forward.1} parent=0
    _
  %s7 = ssub.s32 1, %s5
  %s8 = scalar_select 0, %s7, %s5
  $region1: #{asc_forward.1} parent=0
    #allocation2 [shape = 'u8[98304]{0}', space=vmem, size = 0x18000, scoped, tag = 'input window, operand 1, single buffered']
    #allocation3 [shape = 's32[1]{0}', space=sflag, size = 0x4, scoped, tag = 'scoped memory for asc_forward.1']
    %9 = vsyncpa [#allocation3], 0
    // Predicated region
    $region2: #{asc_forward.1} parent=1 // pred_check
      _
    $region3: #{asc_forward.1} parent=1 // pred_check_branch
      %11 = sbr.rel (0) target = $region5
    $region4: #{asc_forward.1} parent=1 // pred_region
      _
    $region5: #{asc_forward.1} parent=1 // pred_fallthru
      _
    // Predicated region
    $region6: #{asc_forward.1} parent=1 // pred_check
      _
    $region7: #{asc_forward.1} parent=1 // pred_check_branch
      %13 = sbr.rel (0) target = $region9
    $region8: #{asc_forward.1} parent=1 // pred_region
      %s15 = ssub.s32 3072, 3072
      %16 = vsyncadd [#allocation3], %s15
      %s17 = sshll.u32 [#allocation2], 4
      %s18 = int_to_ptr.vmem [resolvable:$true] %s17
      %23 = dma.hbm_to_vmem [thread:$0]  %s1, 3072, %s18, [#allocation3], 768, 768, 48
    $region9: #{asc_forward.1} parent=1 // pred_fallthru
      _
    // Predicated region
    $region10: #{asc_forward.1} parent=1 // pred_check
      _
    $region11: #{asc_forward.1} parent=1 // pred_check_branch
      %25 = sbr.rel (0) target = $region13
    $region12: #{asc_forward.1} parent=1 // pred_region
      _
    $region13: #{asc_forward.1} parent=1 // pred_fallthru
      _
    // Predicated region
    $region14: #{asc_forward.1} parent=1 // pred_check
      _
    $region15: #{asc_forward.1} parent=1 // pred_check_branch
      %27 = sbr.rel (0) target = $region17
    $region16: #{asc_forward.1} parent=1 // pred_region
      _
    $region17: #{asc_forward.1} parent=1 // pred_fallthru
      _
    // Predicated region
    $region18: #{asc_forward.1} parent=1 // pred_check
      _
    $region19: #{asc_forward.1} parent=1 // pred_check_branch
      %29 = sbr.rel (0) target = $region21
    $region20: #{asc_forward.1} parent=1 // pred_region
      %30 = dma.done [#allocation3], 3072
    $region21: #{asc_forward.1} parent=1 // pred_fallthru
      _
    %v31 = vld [vmem:[%s3] sm:$0xff]
    %v32 = vld [vmem:[%s3 + $0x8] sm:$0xff]
    %v33 = vld [vmem:[%s3 + $0x10] sm:$0xf]
    %v34 = vld [vmem:[%s0] sm:$0xff]
    %v35 = vld [vmem:[%s0 + $0x8] sm:$0xff]
    %vm36 = vcmask 261120
    %v37 = vsel %vm36, %v34, 0.0
    %38 = vadd.xlane.f32.xlu0 %v37
    %v39 = vpop.xlane.xlu0 %38
    %v40 = vsel %vm36, %v35, 0.0
    %41 = vadd.xlane.f32.xlu0 %v40
    %v42 = vpop.xlane.xlu0 %41
    %v43 = vrcp.pop 32.0
    %v44 = vmul.f32 %v39, %v43
    %v45 = vmul.f32 %v42, %v43
    %v46 = vmul.f32 %v34, %v34
    %v47 = vmul.f32 %v35, %v35
    %v48 = vsel %vm36, %v46, 0.0
    %49 = vadd.xlane.f32.xlu0 %v48
    %v50 = vpop.xlane.xlu0 %49
    %v51 = vsel %vm36, %v47, 0.0
    %52 = vadd.xlane.f32.xlu0 %v51
    %v53 = vpop.xlane.xlu0 %52
    %v54 = vmul.f32 %v50, %v43
    %v55 = vmul.f32 %v53, %v43
    %v56 = vmul.f32 %v44, %v44
    %v57 = vmul.f32 %v45, %v45
    %v58 = vsub.f32 %v54, %v56
    %v59 = vsub.f32 %v55, %v57
    %v60 = vsub.f32 %v34, %v44
    %v61 = vsub.f32 %v35, %v45
    %v62 = vadd.f32 %v58, 1e-12
    %v63 = vadd.f32 %v59, 1e-12
    %v64 = vrsqrt.pop %v62
    %v65 = vrsqrt.pop %v63
    %v66 = vmul.f32 %v60, %v64
    %v67 = vmul.f32 %v61, %v65
    %v68 = vlaneseq
    %v69 = vshrl.u32 %v68, 7
    %v70 = vsub.s32 0, %v69
    %v71 = vrot.slane %v31, %v70
    %v72 = vmul.f32 %v66, %v71
    %v73 = vmul.f32 %v67, %v71
    %v74 = vlaneseq
    %v75 = vshrl.u32 %v74, 7
    %v76 = vsub.s32 1, %v75
    %v77 = vrot.slane %v31, %v76
    %v78 = vadd.f32 %v72, %v77
    %v79 = vadd.f32 %v73, %v77
    %v80 = vld [vmem:[#allocation2] sm:$0xff]
    %v81 = vld [vmem:[#allocation2 + $0x8] sm:$0xff]
    %v82 = vld [vmem:[#allocation2 + $0x30] sm:$0xff]
    %v83 = vld [vmem:[#allocation2 + $0x38] sm:$0xff]
    %v84 = vld [vmem:[#allocation2 + $0x60] sm:$0xff]
    %v85 = vld [vmem:[#allocation2 + $0x68] sm:$0xff]
    %v86 = vld [vmem:[#allocation2 + $0x90] sm:$0xff]
    %v87 = vld [vmem:[#allocation2 + $0x98] sm:$0xff]
    %v88 = vlaneseq
    %v89 = vshrl.u32 %v88, 7
    %v90 = vsub.s32 2, %v89
    %v91 = vrot.slane %v31, %v90
    %v92 = vlaneseq
    %v93 = vshrl.u32 %v92, 7
    %v94 = vsub.s32 2, %v93
    %v95 = vrot.slane %v32, %v94
    %v97 = vsel %vm36, %v78, 0
    %v100 = vsel %vm36, %v79, 0
    %102 = vmatprep.subr.mxu0 0.0
    %103 = vmatpush1.msra.mxu0 0.0
    %104 = vmatprep.subr.mxu0 0.0
    %105 = vmatpush1.msra.mxu0 0.0
    %106 = vmatprep.subr.mxu0 0.0
    %107 = vmatpush1.msra.mxu0 0.0
    %108 = vmatprep.subr.mxu0 0.0
    %109 = vmatpush1.msra.mxu0 0.0
    %110 = vmatprep.subr.mxu0 0.0
    %111 = vmatpush1.msra.mxu0 0.0
    %112 = vmatprep.subr.mxu0 0.0
    %113 = vmatpush1.msra.mxu0 0.0
    %114 = vmatprep.subr.mxu0 0.0
    %115 = vmatpush1.msra.mxu0 0.0
    %116 = vmatprep.subr.mxu0 0.0
    %117 = vmatpush1.msra.mxu0 0.0
    %118 = vmatprep.subr.mxu0 0.0
    %119 = vmatpush1.msra.mxu0 0.0
    %120 = vmatprep.subr.mxu0 0.0
    %121 = vmatpush1.msra.mxu0 0.0
    %122 = vmatprep.subr.mxu0 0.0
    %123 = vmatpush1.msra.mxu0 0.0
    %124 = vmatprep.subr.mxu0 0.0
    %125 = vmatpush1.msra.mxu0 0.0
    %126 = vmatprep.subr.mxu0 %v87
    %127 = vmatpush1.msra.mxu0 %v86
    %128 = vmatprep.subr.mxu0 %v85
    %129 = vmatpush1.msra.mxu0 %v84
    %130 = vmatprep.subr.mxu0 %v83
    %131 = vmatpush1.msra.mxu0 %v82
    %132 = vmatprep.subr.mxu0 %v81
    %133 = vmatpush1.msra.mxu0 %v80
    %134 = vmatprep.subr.mxu0 0.0
    %135 = vmatpush2.msra.mxu0 0.0
    %136 = vmatprep.subr.mxu0 0.0
    %137 = vmatpush2.msra.mxu0 0.0
    %138 = vmatprep.subr.mxu0 0.0
    %139 = vmatpush2.msra.mxu0 0.0
    %140 = vmatprep.subr.mxu0 0.0
    %141 = vmatpush2.msra.mxu0 0.0
    %142 = vmatprep.subr.mxu0 0.0
    %143 = vmatpush2.msra.mxu0 0.0
    %144 = vmatprep.subr.mxu0 0.0
    %145 = vmatpush2.msra.mxu0 0.0
    %146 = vmatprep.subr.mxu0 0.0
    %147 = vmatpush2.msra.mxu0 0.0
    %148 = vmatprep.subr.mxu0 0.0
    %149 = vmatpush2.msra.mxu0 0.0
    %150 = vmatprep.subr.mxu0 0.0
    %151 = vmatpush2.msra.mxu0 0.0
    %152 = vmatprep.subr.mxu0 0.0
    %153 = vmatpush2.msra.mxu0 0.0
    %154 = vmatprep.subr.mxu0 0.0
    %155 = vmatpush2.msra.mxu0 0.0
    %156 = vmatprep.subr.mxu0 0.0
    %157 = vmatpush2.msra.mxu0 0.0
    %158 = vmatprep.subr.mxu0 0.0
    %159 = vmatpush2.msra.mxu0 0.0
    %160 = vmatprep.subr.mxu0 0.0
    %161 = vmatpush2.msra.mxu0 0.0
    %162 = vmatprep.subr.mxu0 0.0
    %163 = vmatpush2.msra.mxu0 0.0
    %164 = vmatprep.subr.mxu0 0.0
    %165 = vmatpush2.msra.mxu0 0.0
    %166 = vmatprep.mubr.f32.mxu0 0.0
    %167 = vmatmul.mubr.f32.gmra.mxu0 %v97
    %v168 = vpop.f32.mrf.mxu0
    %v169 = vadd.f32 %v91, %v168
    %v170 = vpop.f32.mrf.mxu0
    %v171 = vadd.f32 %v95, %v170
    %172 = vmatprep.mubr.f32.mxu0 0.0
    %173 = vmatmul.mubr.f32.gmra.mxu0 %v100
    %v174 = vpop.f32.mrf.mxu0
    %v175 = vadd.f32 %v91, %v174
    %v176 = vpop.f32.mrf.mxu0
    %v177 = vadd.f32 %v95, %v176
    %178 = vdwg.mxu0
    %180 = vrot.lane.b32.xlu0 %v169, 96
    %v181 = vpop.permute.xlu0 %180
    %183 = vrot.lane.b32.xlu0 %v171, 96
    %v184 = vpop.permute.xlu0 %183
    %185 = vrot.lane.b32.xlu0 %v169, 64
    %v186 = vpop.permute.xlu0 %185
    %v187 = vsel %vm36, %v169, 0
    %v189 = vsel %vm36, %v181, 0
    %v191 = vsel %vm36, %v186, 0
    %193 = vmatprep.subr.mxu0 0.0
    %194 = vmatpush1.xpose.msra.mxu0 0.0
    %195 = vmatprep.subr.mxu0 0.0
    %196 = vmatpush1.xpose.msra.mxu0 0.0
    %197 = vmatprep.subr.mxu0 0.0
    %198 = vmatpush1.xpose.msra.mxu0 0.0
    %199 = vmatprep.subr.mxu0 0.0
    %200 = vmatpush1.xpose.msra.mxu0 0.0
    %201 = vmatprep.subr.mxu0 0.0
    %202 = vmatpush1.xpose.msra.mxu0 0.0
    %203 = vmatprep.subr.mxu0 0.0
    %204 = vmatpush1.xpose.msra.mxu0 0.0
    %205 = vmatprep.subr.mxu0 0.0
    %206 = vmatpush1.xpose.msra.mxu0 0.0
    %207 = vmatprep.subr.mxu0 0.0
    %208 = vmatpush1.xpose.msra.mxu0 0.0
    %209 = vmatprep.subr.mxu0 0.0
    %210 = vmatpush1.xpose.msra.mxu0 0.0
    %211 = vmatprep.subr.mxu0 0.0
    %212 = vmatpush1.xpose.msra.mxu0 0.0
    %213 = vmatprep.subr.mxu0 0.0
    %214 = vmatpush1.xpose.msra.mxu0 0.0
    %215 = vmatprep.subr.mxu0 0.0
    %216 = vmatpush1.xpose.msra.mxu0 0.0
    %217 = vmatprep.subr.mxu0 0.0
    %218 = vmatpush1.xpose.msra.mxu0 0.0
    %219 = vmatprep.subr.mxu0 0.0
    %220 = vmatpush1.xpose.msra.mxu0 0.0
    %221 = vmatprep.subr.mxu0 0.0
    %222 = vmatpush1.xpose.msra.mxu0 0.0
    %223 = vmatprep.subr.mxu0 0.0
    %224 = vmatpush1.xpose.msra.mxu0 %v191
    %225 = vmatprep.subr.mxu0 0.0
    %226 = vmatpush2.xpose.msra.mxu0 0.0
    %227 = vmatprep.subr.mxu0 0.0
    %228 = vmatpush2.xpose.msra.mxu0 0.0
    %229 = vmatprep.subr.mxu0 0.0
    %230 = vmatpush2.xpose.msra.mxu0 0.0
    %231 = vmatprep.subr.mxu0 0.0
    %232 = vmatpush2.xpose.msra.mxu0 0.0
    %233 = vmatprep.subr.mxu0 0.0
    %234 = vmatpush2.xpose.msra.mxu0 0.0
    %235 = vmatprep.subr.mxu0 0.0
    %236 = vmatpush2.xpose.msra.mxu0 0.0
    %237 = vmatprep.subr.mxu0 0.0
    %238 = vmatpush2.xpose.msra.mxu0 0.0
    %239 = vmatprep.subr.mxu0 0.0
    %240 = vmatpush2.xpose.msra.mxu0 0.0
    %241 = vmatprep.subr.mxu0 0.0
    %242 = vmatpush2.xpose.msra.mxu0 0.0
    %243 = vmatprep.subr.mxu0 0.0
    %244 = vmatpush2.xpose.msra.mxu0 0.0
    %245 = vmatprep.subr.mxu0 0.0
    %246 = vmatpush2.xpose.msra.mxu0 0.0
    %247 = vmatprep.subr.mxu0 0.0
    %248 = vmatpush2.xpose.msra.mxu0 0.0
    %249 = vmatprep.subr.mxu0 0.0
    %250 = vmatpush2.xpose.msra.mxu0 0.0
    %251 = vmatprep.subr.mxu0 0.0
    %252 = vmatpush2.xpose.msra.mxu0 0.0
    %253 = vmatprep.subr.mxu0 0.0
    %254 = vmatpush2.xpose.msra.mxu0 0.0
    %255 = vmatprep.subr.mxu0 0.0
    %256 = vmatpush2.xpose.msra.mxu0 0.0
    %257 = vmatprep.mubr.f32.mxu0 0.0
    %258 = vmatmul.mubr.f32.gmra.mxu0 %v187
    %v259 = vpop.f32.mrf.mxu0
    %v260 = vadd.f32 0.0, %v259
    %v261 = vpop.f32.mrf.mxu0
    %262 = vmatprep.mubr.f32.mxu0 0.0
    %263 = vmatmul.mubr.f32.gmra.mxu0 %v189
    %v264 = vpop.f32.mrf.mxu0
    %v265 = vadd.f32 0.0, %v264
    %v266 = vpop.f32.mrf.mxu0
    %267 = vdwg.mxu0
    %vm268 = vcmask 64512
    %v269 = vsel %vm268, %v260, -inf
    %270 = vmax.xlane.f32.xlu0 %v269
    %v271 = vpop.xlane.xlu0 %270
    %v272 = vsel %vm268, %v265, -inf
    %273 = vmax.xlane.f32.xlu0 %v272
    %v274 = vpop.xlane.xlu0 %273
    %v275 = vsub.f32 %v260, %v271
    %v276 = vsub.f32 %v265, %v274
    %v277 = vmul.f32 %v275, 1.442695
    %v278 = vpow.pop %v277
    %v279 = vmul.f32 %v276, 1.442695
    %v280 = vpow.pop %v279
    %v281 = vsel %vm268, %v278, 0.0
    %282 = vadd.xlane.f32.xlu0 %v281
    %v283 = vpop.xlane.xlu0 %282
    %v284 = vsel %vm268, %v280, 0.0
    %285 = vadd.xlane.f32.xlu0 %v284
    %v286 = vpop.xlane.xlu0 %285
    %v287 = vrcp.pop %v283
    %v288 = vrcp.pop %v286
    %v289 = vmul.f32 %v278, %v287
    %v290 = vmul.f32 %v280, %v288
    %292 = vrot.lane.b32.xlu0 %v290, 8
    %v293 = vpop.permute.xlu0 %292
    %v295 = vsel %vm268, %v289, %v293
    %296 = vrot.lane.b32.xlu0 %v169, 32
    %v297 = vpop.permute.xlu0 %296
    %298 = vrot.lane.b32.xlu0 %v184, 32
    %v299 = vpop.permute.xlu0 %298
    %vm302 = vcmask 130048
    %v304 = vsel %vm302, %v295, 0
    %306 = vmatprep.subr.mxu0 0.0
    %307 = vmatpush1.msra.mxu0 0.0
    %308 = vmatprep.subr.mxu0 0.0
    %309 = vmatpush1.msra.mxu0 0.0
    %310 = vmatprep.subr.mxu0 0.0
    %311 = vmatpush1.msra.mxu0 0.0
    %312 = vmatprep.subr.mxu0 0.0
    %313 = vmatpush1.msra.mxu0 0.0
    %314 = vmatprep.subr.mxu0 0.0
    %315 = vmatpush1.msra.mxu0 0.0
    %316 = vmatprep.subr.mxu0 0.0
    %317 = vmatpush1.msra.mxu0 0.0
    %318 = vmatprep.subr.mxu0 0.0
    %319 = vmatpush1.msra.mxu0 0.0
    %320 = vmatprep.subr.mxu0 0.0
    %321 = vmatpush1.msra.mxu0 0.0
    %322 = vmatprep.subr.mxu0 0.0
    %323 = vmatpush1.msra.mxu0 0.0
    %324 = vmatprep.subr.mxu0 0.0
    %325 = vmatpush1.msra.mxu0 0.0
    %326 = vmatprep.subr.mxu0 0.0
    %327 = vmatpush1.msra.mxu0 0.0
    %328 = vmatprep.subr.mxu0 0.0
    %329 = vmatpush1.msra.mxu0 0.0
    %330 = vmatprep.subr.mxu0 0.0
    %331 = vmatpush1.msra.mxu0 0.0
    %332 = vmatprep.subr.mxu0 0.0
    %333 = vmatpush1.msra.mxu0 0.0
    %334 = vmatprep.subr.mxu0 0.0
    %335 = vmatpush1.msra.mxu0 %v299
    %336 = vmatprep.subr.mxu0 0.0
    %337 = vmatpush1.msra.mxu0 %v297
    %338 = vmatprep.subr.mxu0 0.0
    %339 = vmatpush2.msra.mxu0 0.0
    %340 = vmatprep.subr.mxu0 0.0
    %341 = vmatpush2.msra.mxu0 0.0
    %342 = vmatprep.subr.mxu0 0.0
    %343 = vmatpush2.msra.mxu0 0.0
    %344 = vmatprep.subr.mxu0 0.0
    %345 = vmatpush2.msra.mxu0 0.0
    %346 = vmatprep.subr.mxu0 0.0
    %347 = vmatpush2.msra.mxu0 0.0
    %348 = vmatprep.subr.mxu0 0.0
    %349 = vmatpush2.msra.mxu0 0.0
    %350 = vmatprep.subr.mxu0 0.0
    %351 = vmatpush2.msra.mxu0 0.0
    %352 = vmatprep.subr.mxu0 0.0
    %353 = vmatpush2.msra.mxu0 0.0
    %354 = vmatprep.subr.mxu0 0.0
    %355 = vmatpush2.msra.mxu0 0.0
    %356 = vmatprep.subr.mxu0 0.0
    %357 = vmatpush2.msra.mxu0 0.0
    %358 = vmatprep.subr.mxu0 0.0
    %359 = vmatpush2.msra.mxu0 0.0
    %360 = vmatprep.subr.mxu0 0.0
    %361 = vmatpush2.msra.mxu0 0.0
    %362 = vmatprep.subr.mxu0 0.0
    %363 = vmatpush2.msra.mxu0 0.0
    %364 = vmatprep.subr.mxu0 0.0
    %365 = vmatpush2.msra.mxu0 0.0
    %366 = vmatprep.subr.mxu0 0.0
    %367 = vmatpush2.msra.mxu0 0.0
    %368 = vmatprep.subr.mxu0 0.0
    %369 = vmatpush2.msra.mxu0 0.0
    %370 = vmatprep.mubr.f32.mxu0 0.0
    %371 = vmatmul.mubr.f32.gmra.mxu0 %v304
    %v372 = vpop.f32.mrf.mxu0
    %v373 = vadd.f32 0.0, %v372
    %v374 = vpop.f32.mrf.mxu0
    %375 = vdwg.mxu0
    %377 = vrot.lane.b32.xlu0 %v175, 96
    %v378 = vpop.permute.xlu0 %377
    %380 = vrot.lane.b32.xlu0 %v177, 96
    %v381 = vpop.permute.xlu0 %380
    %382 = vrot.lane.b32.xlu0 %v175, 64
    %v383 = vpop.permute.xlu0 %382
    %v384 = vsel %vm36, %v175, 0
    %v386 = vsel %vm36, %v378, 0
    %v388 = vsel %vm36, %v383, 0
    %390 = vmatprep.subr.mxu0 0.0
    %391 = vmatpush1.xpose.msra.mxu0 0.0
    %392 = vmatprep.subr.mxu0 0.0
    %393 = vmatpush1.xpose.msra.mxu0 0.0
    %394 = vmatprep.subr.mxu0 0.0
    %395 = vmatpush1.xpose.msra.mxu0 0.0
    %396 = vmatprep.subr.mxu0 0.0
    %397 = vmatpush1.xpose.msra.mxu0 0.0
    %398 = vmatprep.subr.mxu0 0.0
    %399 = vmatpush1.xpose.msra.mxu0 0.0
    %400 = vmatprep.subr.mxu0 0.0
    %401 = vmatpush1.xpose.msra.mxu0 0.0
    %402 = vmatprep.subr.mxu0 0.0
    %403 = vmatpush1.xpose.msra.mxu0 0.0
    %404 = vmatprep.subr.mxu0 0.0
    %405 = vmatpush1.xpose.msra.mxu0 0.0
    %406 = vmatprep.subr.mxu0 0.0
    %407 = vmatpush1.xpose.msra.mxu0 0.0
    %408 = vmatprep.subr.mxu0 0.0
    %409 = vmatpush1.xpose.msra.mxu0 0.0
    %410 = vmatprep.subr.mxu0 0.0
    %411 = vmatpush1.xpose.msra.mxu0 0.0
    %412 = vmatprep.subr.mxu0 0.0
    %413 = vmatpush1.xpose.msra.mxu0 0.0
    %414 = vmatprep.subr.mxu0 0.0
    %415 = vmatpush1.xpose.msra.mxu0 0.0
    %416 = vmatprep.subr.mxu0 0.0
    %417 = vmatpush1.xpose.msra.mxu0 0.0
    %418 = vmatprep.subr.mxu0 0.0
    %419 = vmatpush1.xpose.msra.mxu0 0.0
    %420 = vmatprep.subr.mxu0 0.0
    %421 = vmatpush1.xpose.msra.mxu0 %v388
    %422 = vmatprep.subr.mxu0 0.0
    %423 = vmatpush2.xpose.msra.mxu0 0.0
    %424 = vmatprep.subr.mxu0 0.0
    %425 = vmatpush2.xpose.msra.mxu0 0.0
    %426 = vmatprep.subr.mxu0 0.0
    %427 = vmatpush2.xpose.msra.mxu0 0.0
    %428 = vmatprep.subr.mxu0 0.0
    %429 = vmatpush2.xpose.msra.mxu0 0.0
    %430 = vmatprep.subr.mxu0 0.0
    %431 = vmatpush2.xpose.msra.mxu0 0.0
    %432 = vmatprep.subr.mxu0 0.0
    %433 = vmatpush2.xpose.msra.mxu0 0.0
    %434 = vmatprep.subr.mxu0 0.0
    %435 = vmatpush2.xpose.msra.mxu0 0.0
    %436 = vmatprep.subr.mxu0 0.0
    %437 = vmatpush2.xpose.msra.mxu0 0.0
    %438 = vmatprep.subr.mxu0 0.0
    %439 = vmatpush2.xpose.msra.mxu0 0.0
    %440 = vmatprep.subr.mxu0 0.0
    %441 = vmatpush2.xpose.msra.mxu0 0.0
    %442 = vmatprep.subr.mxu0 0.0
    %443 = vmatpush2.xpose.msra.mxu0 0.0
    %444 = vmatprep.subr.mxu0 0.0
    %445 = vmatpush2.xpose.msra.mxu0 0.0
    %446 = vmatprep.subr.mxu0 0.0
    %447 = vmatpush2.xpose.msra.mxu0 0.0
    %448 = vmatprep.subr.mxu0 0.0
    %449 = vmatpush2.xpose.msra.mxu0 0.0
    %450 = vmatprep.subr.mxu0 0.0
    %451 = vmatpush2.xpose.msra.mxu0 0.0
    %452 = vmatprep.subr.mxu0 0.0
    %453 = vmatpush2.xpose.msra.mxu0 0.0
    %454 = vmatprep.mubr.f32.mxu0 0.0
    %455 = vmatmul.mubr.f32.gmra.mxu0 %v384
    %v456 = vpop.f32.mrf.mxu0
    %v457 = vadd.f32 0.0, %v456
    %v458 = vpop.f32.mrf.mxu0
    %459 = vmatprep.mubr.f32.mxu0 0.0
    %460 = vmatmul.mubr.f32.gmra.mxu0 %v386
    %v461 = vpop.f32.mrf.mxu0
    %v462 = vadd.f32 0.0, %v461
    %v463 = vpop.f32.mrf.mxu0
    %464 = vdwg.mxu0
    %v465 = vsel %vm268, %v457, -inf
    %466 = vmax.xlane.f32.xlu0 %v465
    %v467 = vpop.xlane.xlu0 %466
    %v468 = vsel %vm268, %v462, -inf
    %469 = vmax.xlane.f32.xlu0 %v468
    %v470 = vpop.xlane.xlu0 %469
    %v471 = vsub.f32 %v457, %v467
    %v472 = vsub.f32 %v462, %v470
    %v473 = vmul.f32 %v471, 1.442695
    %v474 = vpow.pop %v473
    %v475 = vmul.f32 %v472, 1.442695
    %v476 = vpow.pop %v475
    %v477 = vsel %vm268, %v474, 0.0
    %478 = vadd.xlane.f32.xlu0 %v477
    %v479 = vpop.xlane.xlu0 %478
    %v480 = vsel %vm268, %v476, 0.0
    %481 = vadd.xlane.f32.xlu0 %v480
    %v482 = vpop.xlane.xlu0 %481
    %v483 = vrcp.pop %v479
    %v484 = vrcp.pop %v482
    %v485 = vmul.f32 %v474, %v483
    %v486 = vmul.f32 %v476, %v484
    %488 = vrot.lane.b32.xlu0 %v486, 8
    %v489 = vpop.permute.xlu0 %488
    %v491 = vsel %vm268, %v485, %v489
    %492 = vrot.lane.b32.xlu0 %v175, 32
    %v493 = vpop.permute.xlu0 %492
    %494 = vrot.lane.b32.xlu0 %v381, 32
    %v495 = vpop.permute.xlu0 %494
    %v499 = vsel %vm302, %v491, 0
    %501 = vmatprep.subr.mxu0 0.0
    %502 = vmatpush1.msra.mxu0 0.0
    %503 = vmatprep.subr.mxu0 0.0
    %504 = vmatpush1.msra.mxu0 0.0
    %505 = vmatprep.subr.mxu0 0.0
    %506 = vmatpush1.msra.mxu0 0.0
    %507 = vmatprep.subr.mxu0 0.0
    %508 = vmatpush1.msra.mxu0 0.0
    %509 = vmatprep.subr.mxu0 0.0
    %510 = vmatpush1.msra.mxu0 0.0
    %511 = vmatprep.subr.mxu0 0.0
    %512 = vmatpush1.msra.mxu0 0.0
    %513 = vmatprep.subr.mxu0 0.0
    %514 = vmatpush1.msra.mxu0 0.0
    %515 = vmatprep.subr.mxu0 0.0
    %516 = vmatpush1.msra.mxu0 0.0
    %517 = vmatprep.subr.mxu0 0.0
    %518 = vmatpush1.msra.mxu0 0.0
    %519 = vmatprep.subr.mxu0 0.0
    %520 = vmatpush1.msra.mxu0 0.0
    %521 = vmatprep.subr.mxu0 0.0
    %522 = vmatpush1.msra.mxu0 0.0
    %523 = vmatprep.subr.mxu0 0.0
    %524 = vmatpush1.msra.mxu0 0.0
    %525 = vmatprep.subr.mxu0 0.0
    %526 = vmatpush1.msra.mxu0 0.0
    %527 = vmatprep.subr.mxu0 0.0
    %528 = vmatpush1.msra.mxu0 0.0
    %529 = vmatprep.subr.mxu0 0.0
    %530 = vmatpush1.msra.mxu0 %v495
    %531 = vmatprep.subr.mxu0 0.0
    %532 = vmatpush1.msra.mxu0 %v493
    %533 = vmatprep.subr.mxu0 0.0
    %534 = vmatpush2.msra.mxu0 0.0
    %535 = vmatprep.subr.mxu0 0.0
    %536 = vmatpush2.msra.mxu0 0.0
    %537 = vmatprep.subr.mxu0 0.0
    %538 = vmatpush2.msra.mxu0 0.0
    %539 = vmatprep.subr.mxu0 0.0
    %540 = vmatpush2.msra.mxu0 0.0
    %541 = vmatprep.subr.mxu0 0.0
    %542 = vmatpush2.msra.mxu0 0.0
    %543 = vmatprep.subr.mxu0 0.0
    %544 = vmatpush2.msra.mxu0 0.0
    %545 = vmatprep.subr.mxu0 0.0
    %546 = vmatpush2.msra.mxu0 0.0
    %547 = vmatprep.subr.mxu0 0.0
    %548 = vmatpush2.msra.mxu0 0.0
    %549 = vmatprep.subr.mxu0 0.0
    %550 = vmatpush2.msra.mxu0 0.0
    %551 = vmatprep.subr.mxu0 0.0
    %552 = vmatpush2.msra.mxu0 0.0
    %553 = vmatprep.subr.mxu0 0.0
    %554 = vmatpush2.msra.mxu0 0.0
    %555 = vmatprep.subr.mxu0 0.0
    %556 = vmatpush2.msra.mxu0 0.0
    %557 = vmatprep.subr.mxu0 0.0
    %558 = vmatpush2.msra.mxu0 0.0
    %559 = vmatprep.subr.mxu0 0.0
    %560 = vmatpush2.msra.mxu0 0.0
    %561 = vmatprep.subr.mxu0 0.0
    %562 = vmatpush2.msra.mxu0 0.0
    %563 = vmatprep.subr.mxu0 0.0
    %564 = vmatpush2.msra.mxu0 0.0
    %565 = vmatprep.mubr.f32.mxu0 0.0
    %566 = vmatmul.mubr.f32.gmra.mxu0 %v499
    %v567 = vpop.f32.mrf.mxu0
    %v568 = vadd.f32 0.0, %v567
    %v569 = vpop.f32.mrf.mxu0
    %570 = vdwg.mxu0
    %v571 = vld [vmem:[#allocation2 + $0x20] sm:$0xff]
    %v572 = vld [vmem:[#allocation2 + $0x50] sm:$0xff]
    %v573 = vld [vmem:[#allocation2 + $0x80] sm:$0xff]
    %v574 = vld [vmem:[#allocation2 + $0xb0] sm:$0xff]
    %v575 = vlaneseq
    %v576 = vshrl.u32 %v575, 7
    %v577 = vsub.s32 3, %v576
    %v578 = vrot.slane %v31, %v577
    %v580 = vsel %vm36, %v373, 0
    %v583 = vsel %vm36, %v568, 0
    %585 = vmatprep.subr.mxu0 0.0
    %586 = vmatpush1.msra.mxu0 0.0
    %587 = vmatprep.subr.mxu0 0.0
    %588 = vmatpush1.msra.mxu0 0.0
    %589 = vmatprep.subr.mxu0 0.0
    %590 = vmatpush1.msra.mxu0 0.0
    %591 = vmatprep.subr.mxu0 0.0
    %592 = vmatpush1.msra.mxu0 0.0
    %593 = vmatprep.subr.mxu0 0.0
    %594 = vmatpush1.msra.mxu0 0.0
    %595 = vmatprep.subr.mxu0 0.0
    %596 = vmatpush1.msra.mxu0 0.0
    %597 = vmatprep.subr.mxu0 0.0
    %598 = vmatpush1.msra.mxu0 0.0
    %599 = vmatprep.subr.mxu0 0.0
    %600 = vmatpush1.msra.mxu0 0.0
    %601 = vmatprep.subr.mxu0 0.0
    %602 = vmatpush1.msra.mxu0 0.0
    %603 = vmatprep.subr.mxu0 0.0
    %604 = vmatpush1.msra.mxu0 0.0
    %605 = vmatprep.subr.mxu0 0.0
    %606 = vmatpush1.msra.mxu0 0.0
    %607 = vmatprep.subr.mxu0 0.0
    %608 = vmatpush1.msra.mxu0 0.0
    %609 = vmatprep.subr.mxu0 0.0
    %610 = vmatpush1.msra.mxu0 %v574
    %611 = vmatprep.subr.mxu0 0.0
    %612 = vmatpush1.msra.mxu0 %v573
    %613 = vmatprep.subr.mxu0 0.0
    %614 = vmatpush1.msra.mxu0 %v572
    %615 = vmatprep.subr.mxu0 0.0
    %616 = vmatpush1.msra.mxu0 %v571
    %617 = vmatprep.subr.mxu0 0.0
    %618 = vmatpush2.msra.mxu0 0.0
    %619 = vmatprep.subr.mxu0 0.0
    %620 = vmatpush2.msra.mxu0 0.0
    %621 = vmatprep.subr.mxu0 0.0
    %622 = vmatpush2.msra.mxu0 0.0
    %623 = vmatprep.subr.mxu0 0.0
    %624 = vmatpush2.msra.mxu0 0.0
    %625 = vmatprep.subr.mxu0 0.0
    %626 = vmatpush2.msra.mxu0 0.0
    %627 = vmatprep.subr.mxu0 0.0
    %628 = vmatpush2.msra.mxu0 0.0
    %629 = vmatprep.subr.mxu0 0.0
    %630 = vmatpush2.msra.mxu0 0.0
    %631 = vmatprep.subr.mxu0 0.0
    %632 = vmatpush2.msra.mxu0 0.0
    %633 = vmatprep.subr.mxu0 0.0
    %634 = vmatpush2.msra.mxu0 0.0
    %635 = vmatprep.subr.mxu0 0.0
    %636 = vmatpush2.msra.mxu0 0.0
    %637 = vmatprep.subr.mxu0 0.0
    %638 = vmatpush2.msra.mxu0 0.0
    %639 = vmatprep.subr.mxu0 0.0
    %640 = vmatpush2.msra.mxu0 0.0
    %641 = vmatprep.subr.mxu0 0.0
    %642 = vmatpush2.msra.mxu0 0.0
    %643 = vmatprep.subr.mxu0 0.0
    %644 = vmatpush2.msra.mxu0 0.0
    %645 = vmatprep.subr.mxu0 0.0
    %646 = vmatpush2.msra.mxu0 0.0
    %647 = vmatprep.subr.mxu0 0.0
    %648 = vmatpush2.msra.mxu0 0.0
    %649 = vmatprep.mubr.f32.mxu0 0.0
    %650 = vmatmul.mubr.f32.gmra.mxu0 %v580
    %v651 = vpop.f32.mrf.mxu0
    %v652 = vadd.f32 %v578, %v651
    %v653 = vpop.f32.mrf.mxu0
    %654 = vmatprep.mubr.f32.mxu0 0.0
    %655 = vmatmul.mubr.f32.gmra.mxu0 %v583
    %v656 = vpop.f32.mrf.mxu0
    %v657 = vadd.f32 %v578, %v656
    %v658 = vpop.f32.mrf.mxu0
    %659 = vdwg.mxu0
    %v660 = vadd.f32 %v78, %v652
    %v661 = vadd.f32 %v79, %v657
    %v662 = vsel %vm36, %v660, 0.0
    %663 = vadd.xlane.f32.xlu0 %v662
    %v664 = vpop.xlane.xlu0 %663
    %v665 = vsel %vm36, %v661, 0.0
    %666 = vadd.xlane.f32.xlu0 %v665
    %v667 = vpop.xlane.xlu0 %666
    %v668 = vmul.f32 %v664, %v43
    %v669 = vmul.f32 %v667, %v43
    %v670 = vmul.f32 %v660, %v660
    %v671 = vmul.f32 %v661, %v661
    %v672 = vsel %vm36, %v670, 0.0
    %673 = vadd.xlane.f32.xlu0 %v672
    %v674 = vpop.xlane.xlu0 %673
    %v675 = vsel %vm36, %v671, 0.0
    %676 = vadd.xlane.f32.xlu0 %v675
    %v677 = vpop.xlane.xlu0 %676
    %v678 = vmul.f32 %v674, %v43
    %v679 = vmul.f32 %v677, %v43
    %v680 = vmul.f32 %v668, %v668
    %v681 = vmul.f32 %v669, %v669
    %v682 = vsub.f32 %v678, %v680
    %v683 = vsub.f32 %v679, %v681
    %v684 = vsub.f32 %v660, %v668
    %v685 = vsub.f32 %v661, %v669
    %v686 = vadd.f32 %v682, 1e-12
    %v687 = vadd.f32 %v683, 1e-12
    %v688 = vrsqrt.pop %v686
    %v689 = vrsqrt.pop %v687
    %v690 = vmul.f32 %v684, %v688
    %v691 = vmul.f32 %v685, %v689
    %v692 = vlaneseq
    %v693 = vshrl.u32 %v692, 7
    %v694 = vsub.s32 4, %v693
    %v695 = vrot.slane %v31, %v694
    %v696 = vmul.f32 %v690, %v695
    %v697 = vmul.f32 %v691, %v695
    %v698 = vlaneseq
    %v699 = vshrl.u32 %v698, 7
    %v700 = vsub.s32 5, %v699
    %v701 = vrot.slane %v31, %v700
    %v702 = vadd.f32 %v696, %v701
    %v703 = vadd.f32 %v697, %v701
    %v704 = vld [vmem:[#allocation2 + $0x10] sm:$0xff]
    %v705 = vld [vmem:[#allocation2 + $0x40] sm:$0xff]
    %v706 = vld [vmem:[#allocation2 + $0x70] sm:$0xff]
    %v707 = vld [vmem:[#allocation2 + $0xa0] sm:$0xff]
    %v708 = vlaneseq
    %v709 = vshrl.u32 %v708, 7
    %v710 = vsub.s32 6, %v709
    %v711 = vrot.slane %v31, %v710
    %v713 = vsel %vm36, %v702, 0
    %v716 = vsel %vm36, %v703, 0
    %718 = vmatprep.subr.mxu0 0.0
    %719 = vmatpush1.msra.mxu0 0.0
    %720 = vmatprep.subr.mxu0 0.0
    %721 = vmatpush1.msra.mxu0 0.0
    %722 = vmatprep.subr.mxu0 0.0
    %723 = vmatpush1.msra.mxu0 0.0
    %724 = vmatprep.subr.mxu0 0.0
    %725 = vmatpush1.msra.mxu0 0.0
    %726 = vmatprep.subr.mxu0 0.0
    %727 = vmatpush1.msra.mxu0 0.0
    %728 = vmatprep.subr.mxu0 0.0
    %729 = vmatpush1.msra.mxu0 0.0
    %730 = vmatprep.subr.mxu0 0.0
    %731 = vmatpush1.msra.mxu0 0.0
    %732 = vmatprep.subr.mxu0 0.0
    %733 = vmatpush1.msra.mxu0 0.0
    %734 = vmatprep.subr.mxu0 0.0
    %735 = vmatpush1.msra.mxu0 0.0
    %736 = vmatprep.subr.mxu0 0.0
    %737 = vmatpush1.msra.mxu0 0.0
    %738 = vmatprep.subr.mxu0 0.0
    %739 = vmatpush1.msra.mxu0 0.0
    %740 = vmatprep.subr.mxu0 0.0
    %741 = vmatpush1.msra.mxu0 0.0
    %742 = vmatprep.subr.mxu0 0.0
    %743 = vmatpush1.msra.mxu0 %v707
    %744 = vmatprep.subr.mxu0 0.0
    %745 = vmatpush1.msra.mxu0 %v706
    %746 = vmatprep.subr.mxu0 0.0
    %747 = vmatpush1.msra.mxu0 %v705
    %748 = vmatprep.subr.mxu0 0.0
    %749 = vmatpush1.msra.mxu0 %v704
    %750 = vmatprep.subr.mxu0 0.0
    %751 = vmatpush2.msra.mxu0 0.0
    %752 = vmatprep.subr.mxu0 0.0
    %753 = vmatpush2.msra.mxu0 0.0
    %754 = vmatprep.subr.mxu0 0.0
    %755 = vmatpush2.msra.mxu0 0.0
    %756 = vmatprep.subr.mxu0 0.0
    %757 = vmatpush2.msra.mxu0 0.0
    %758 = vmatprep.subr.mxu0 0.0
    %759 = vmatpush2.msra.mxu0 0.0
    %760 = vmatprep.subr.mxu0 0.0
    %761 = vmatpush2.msra.mxu0 0.0
    %762 = vmatprep.subr.mxu0 0.0
    %763 = vmatpush2.msra.mxu0 0.0
    %764 = vmatprep.subr.mxu0 0.0
    %765 = vmatpush2.msra.mxu0 0.0
    %766 = vmatprep.subr.mxu0 0.0
    %767 = vmatpush2.msra.mxu0 0.0
    %768 = vmatprep.subr.mxu0 0.0
    %769 = vmatpush2.msra.mxu0 0.0
    %770 = vmatprep.subr.mxu0 0.0
    %771 = vmatpush2.msra.mxu0 0.0
    %772 = vmatprep.subr.mxu0 0.0
    %773 = vmatpush2.msra.mxu0 0.0
    %774 = vmatprep.subr.mxu0 0.0
    %775 = vmatpush2.msra.mxu0 0.0
    %776 = vmatprep.subr.mxu0 0.0
    %777 = vmatpush2.msra.mxu0 0.0
    %778 = vmatprep.subr.mxu0 0.0
    %779 = vmatpush2.msra.mxu0 0.0
    %780 = vmatprep.subr.mxu0 0.0
    %781 = vmatpush2.msra.mxu0 0.0
    %782 = vmatprep.mubr.f32.mxu0 0.0
    %783 = vmatmul.mubr.f32.gmra.mxu0 %v713
    %v784 = vpop.f32.mrf.mxu0
    %v785 = vadd.f32 %v711, %v784
    %v786 = vpop.f32.mrf.mxu0
    %787 = vmatprep.mubr.f32.mxu0 0.0
    %788 = vmatmul.mubr.f32.gmra.mxu0 %v716
    %v789 = vpop.f32.mrf.mxu0
    %v790 = vadd.f32 %v711, %v789
    %v791 = vpop.f32.mrf.mxu0
    %792 = vdwg.mxu0
    %v793 = vmul.f32 %v785, %v785
    %v794 = vmul.f32 %v790, %v790
    %v795 = vmul.f32 %v785, %v793
    %v796 = vmul.f32 %v790, %v794
    %v797 = vmul.f32 %v795, 0.044715
    %v798 = vmul.f32 %v796, 0.044715
    %v799 = vadd.f32 %v785, %v797
    %v800 = vadd.f32 %v790, %v798
    %v801 = vmul.f32 %v799, 0.7978846
    %v802 = vmul.f32 %v800, 0.7978846
    %v803 = vtanh.pop %v801
    %v804 = vtanh.pop %v802
    %v805 = vadd.f32 %v803, 1.0
    %v806 = vadd.f32 %v804, 1.0
    %v807 = vmul.f32 %v805, 0.5
    %v808 = vmul.f32 %v806, 0.5
    %v809 = vmul.f32 %v785, %v807
    %v810 = vmul.f32 %v790, %v808
    %v811 = vld [vmem:[%s2] sm:$0xff]
    %v812 = vld [vmem:[%s2 + $0x8] sm:$0xff]
    %v813 = vld [vmem:[%s2 + $0x10] sm:$0xff]
    %v814 = vld [vmem:[%s2 + $0x18] sm:$0xff]
    %v815 = vld [vmem:[%s2 + $0x20] sm:$0xff]
    %v816 = vld [vmem:[%s2 + $0x28] sm:$0xff]
    %v817 = vld [vmem:[%s2 + $0x30] sm:$0xff]
    %v818 = vld [vmem:[%s2 + $0x38] sm:$0xff]
    %v819 = vld [vmem:[%s2 + $0x40] sm:$0xff]
    %v820 = vld [vmem:[%s2 + $0x48] sm:$0xff]
    %v821 = vld [vmem:[%s2 + $0x50] sm:$0xff]
    %v822 = vld [vmem:[%s2 + $0x58] sm:$0xff]
    %v823 = vld [vmem:[%s2 + $0x60] sm:$0xff]
    %v824 = vld [vmem:[%s2 + $0x68] sm:$0xff]
    %v825 = vld [vmem:[%s2 + $0x70] sm:$0xff]
    %v826 = vld [vmem:[%s2 + $0x78] sm:$0xff]
    %v827 = vlaneseq
    %v828 = vshrl.u32 %v827, 7
    %v829 = vsub.s32 7, %v828
    %v830 = vrot.slane %v31, %v829
    %831 = vmatprep.subr.mxu0 0.0
    %832 = vmatpush1.msra.mxu0 %v826
    %833 = vmatprep.subr.mxu0 0.0
    %834 = vmatpush1.msra.mxu0 %v825
    %835 = vmatprep.subr.mxu0 0.0
    %836 = vmatpush1.msra.mxu0 %v824
    %837 = vmatprep.subr.mxu0 0.0
    %838 = vmatpush1.msra.mxu0 %v823
    %839 = vmatprep.subr.mxu0 0.0
    %840 = vmatpush1.msra.mxu0 %v822
    %841 = vmatprep.subr.mxu0 0.0
    %842 = vmatpush1.msra.mxu0 %v821
    %843 = vmatprep.subr.mxu0 0.0
    %844 = vmatpush1.msra.mxu0 %v820
    %845 = vmatprep.subr.mxu0 0.0
    %846 = vmatpush1.msra.mxu0 %v819
    %847 = vmatprep.subr.mxu0 0.0
    %848 = vmatpush1.msra.mxu0 %v818
    %849 = vmatprep.subr.mxu0 0.0
    %850 = vmatpush1.msra.mxu0 %v817
    %851 = vmatprep.subr.mxu0 0.0
    %852 = vmatpush1.msra.mxu0 %v816
    %853 = vmatprep.subr.mxu0 0.0
    %854 = vmatpush1.msra.mxu0 %v815
    %855 = vmatprep.subr.mxu0 0.0
    %856 = vmatpush1.msra.mxu0 %v814
    %857 = vmatprep.subr.mxu0 0.0
    %858 = vmatpush1.msra.mxu0 %v813
    %859 = vmatprep.subr.mxu0 0.0
    %860 = vmatpush1.msra.mxu0 %v812
    %861 = vmatprep.subr.mxu0 0.0
    %862 = vmatpush1.msra.mxu0 %v811
    %863 = vmatprep.subr.mxu0 0.0
    %864 = vmatpush2.msra.mxu0 0.0
    %865 = vmatprep.subr.mxu0 0.0
    %866 = vmatpush2.msra.mxu0 0.0
    %867 = vmatprep.subr.mxu0 0.0
    %868 = vmatpush2.msra.mxu0 0.0
    %869 = vmatprep.subr.mxu0 0.0
    %870 = vmatpush2.msra.mxu0 0.0
    %871 = vmatprep.subr.mxu0 0.0
    %872 = vmatpush2.msra.mxu0 0.0
    %873 = vmatprep.subr.mxu0 0.0
    %874 = vmatpush2.msra.mxu0 0.0
    %875 = vmatprep.subr.mxu0 0.0
    %876 = vmatpush2.msra.mxu0 0.0
    %877 = vmatprep.subr.mxu0 0.0
    %878 = vmatpush2.msra.mxu0 0.0
    %879 = vmatprep.subr.mxu0 0.0
    %880 = vmatpush2.msra.mxu0 0.0
    %881 = vmatprep.subr.mxu0 0.0
    %882 = vmatpush2.msra.mxu0 0.0
    %883 = vmatprep.subr.mxu0 0.0
    %884 = vmatpush2.msra.mxu0 0.0
    %885 = vmatprep.subr.mxu0 0.0
    %886 = vmatpush2.msra.mxu0 0.0
    %887 = vmatprep.subr.mxu0 0.0
    %888 = vmatpush2.msra.mxu0 0.0
    %889 = vmatprep.subr.mxu0 0.0
    %890 = vmatpush2.msra.mxu0 0.0
    %891 = vmatprep.subr.mxu0 0.0
    %892 = vmatpush2.msra.mxu0 0.0
    %893 = vmatprep.subr.mxu0 0.0
    %894 = vmatpush2.msra.mxu0 0.0
    %895 = vmatprep.mubr.f32.mxu0 0.0
    %896 = vmatmul.mubr.f32.gmra.mxu0 %v809
    %v897 = vpop.f32.mrf.mxu0
    %v898 = vadd.f32 %v830, %v897
    %v899 = vpop.f32.mrf.mxu0
    %900 = vmatprep.mubr.f32.mxu0 0.0
    %901 = vmatmul.mubr.f32.gmra.mxu0 %v810
    %v902 = vpop.f32.mrf.mxu0
    %v903 = vadd.f32 %v830, %v902
    %v904 = vpop.f32.mrf.mxu0
    %905 = vdwg.mxu0
    %v906 = vadd.f32 %v702, %v898
    %v907 = vadd.f32 %v703, %v903
    %v908 = vsel %vm36, %v906, 0.0
    %909 = vadd.xlane.f32.xlu0 %v908
    %v910 = vpop.xlane.xlu0 %909
    %v911 = vsel %vm36, %v907, 0.0
    %912 = vadd.xlane.f32.xlu0 %v911
    %v913 = vpop.xlane.xlu0 %912
    %v914 = vmul.f32 %v910, %v43
    %v915 = vmul.f32 %v913, %v43
    %v916 = vmul.f32 %v906, %v906
    %v917 = vmul.f32 %v907, %v907
    %v918 = vsel %vm36, %v916, 0.0
    %919 = vadd.xlane.f32.xlu0 %v918
    %v920 = vpop.xlane.xlu0 %919
    %v921 = vsel %vm36, %v917, 0.0
    %922 = vadd.xlane.f32.xlu0 %v921
    %v923 = vpop.xlane.xlu0 %922
    %v924 = vmul.f32 %v920, %v43
    %v925 = vmul.f32 %v923, %v43
    %v926 = vmul.f32 %v914, %v914
    %v927 = vmul.f32 %v915, %v915
    %v928 = vsub.f32 %v924, %v926
    %v929 = vsub.f32 %v925, %v927
    %v930 = vsub.f32 %v906, %v914
    %v931 = vsub.f32 %v907, %v915
    %v932 = vadd.f32 %v928, 1e-12
    %v933 = vadd.f32 %v929, 1e-12
    %v934 = vrsqrt.pop %v932
    %v935 = vrsqrt.pop %v933
    %v936 = vmul.f32 %v930, %v934
    %v937 = vmul.f32 %v931, %v935
    %v938 = vlaneseq
    %v939 = vshrl.u32 %v938, 7
    %v940 = vsub.s32 0, %v939
    %v941 = vrot.slane %v33, %v940
    %v942 = vmul.f32 %v936, %v941
    %v943 = vmul.f32 %v937, %v941
    %v944 = vlaneseq
    %v945 = vshrl.u32 %v944, 7
    %v946 = vsub.s32 1, %v945
    %v947 = vrot.slane %v33, %v946
    %v948 = vadd.f32 %v942, %v947
    %v949 = vadd.f32 %v943, %v947
    %v950 = vld [vmem:[#allocation2 + $0x28] sm:$0xff]
    %v951 = vld [vmem:[#allocation2 + $0x58] sm:$0xff]
    %v952 = vld [vmem:[#allocation2 + $0x88] sm:$0xff]
    %v953 = vld [vmem:[#allocation2 + $0xb8] sm:$0xff]
    %v954 = vlaneseq
    %v955 = vshrl.u32 %v954, 7
    %v956 = vsub.s32 2, %v955
    %v957 = vrot.slane %v33, %v956
    %v959 = vsel %vm36, %v948, 0
    %v962 = vsel %vm36, %v949, 0
    %964 = vmatprep.subr.mxu0 0.0
    %965 = vmatpush1.msra.mxu0 0.0
    %966 = vmatprep.subr.mxu0 0.0
    %967 = vmatpush1.msra.mxu0 0.0
    %968 = vmatprep.subr.mxu0 0.0
    %969 = vmatpush1.msra.mxu0 0.0
    %970 = vmatprep.subr.mxu0 0.0
    %971 = vmatpush1.msra.mxu0 0.0
    %972 = vmatprep.subr.mxu0 0.0
    %973 = vmatpush1.msra.mxu0 0.0
    %974 = vmatprep.subr.mxu0 0.0
    %975 = vmatpush1.msra.mxu0 0.0
    %976 = vmatprep.subr.mxu0 0.0
    %977 = vmatpush1.msra.mxu0 0.0
    %978 = vmatprep.subr.mxu0 0.0
    %979 = vmatpush1.msra.mxu0 0.0
    %980 = vmatprep.subr.mxu0 0.0
    %981 = vmatpush1.msra.mxu0 0.0
    %982 = vmatprep.subr.mxu0 0.0
    %983 = vmatpush1.msra.mxu0 0.0
    %984 = vmatprep.subr.mxu0 0.0
    %985 = vmatpush1.msra.mxu0 0.0
    %986 = vmatprep.subr.mxu0 0.0
    %987 = vmatpush1.msra.mxu0 0.0
    %988 = vmatprep.subr.mxu0 0.0
    %989 = vmatpush1.msra.mxu0 %v953
    %990 = vmatprep.subr.mxu0 0.0
    %991 = vmatpush1.msra.mxu0 %v952
    %992 = vmatprep.subr.mxu0 0.0
    %993 = vmatpush1.msra.mxu0 %v951
    %994 = vmatprep.subr.mxu0 0.0
    %995 = vmatpush1.msra.mxu0 %v950
    %996 = vmatprep.subr.mxu0 0.0
    %997 = vmatpush2.msra.mxu0 0.0
    %998 = vmatprep.subr.mxu0 0.0
    %999 = vmatpush2.msra.mxu0 0.0
    %1000 = vmatprep.subr.mxu0 0.0
    %1001 = vmatpush2.msra.mxu0 0.0
    %1002 = vmatprep.subr.mxu0 0.0
    %1003 = vmatpush2.msra.mxu0 0.0
    %1004 = vmatprep.subr.mxu0 0.0
    %1005 = vmatpush2.msra.mxu0 0.0
    %1006 = vmatprep.subr.mxu0 0.0
    %1007 = vmatpush2.msra.mxu0 0.0
    %1008 = vmatprep.subr.mxu0 0.0
    %1009 = vmatpush2.msra.mxu0 0.0
    %1010 = vmatprep.subr.mxu0 0.0
    %1011 = vmatpush2.msra.mxu0 0.0
    %1012 = vmatprep.subr.mxu0 0.0
    %1013 = vmatpush2.msra.mxu0 0.0
    %1014 = vmatprep.subr.mxu0 0.0
    %1015 = vmatpush2.msra.mxu0 0.0
    %1016 = vmatprep.subr.mxu0 0.0
    %1017 = vmatpush2.msra.mxu0 0.0
    %1018 = vmatprep.subr.mxu0 0.0
    %1019 = vmatpush2.msra.mxu0 0.0
    %1020 = vmatprep.subr.mxu0 0.0
    %1021 = vmatpush2.msra.mxu0 0.0
    %1022 = vmatprep.subr.mxu0 0.0
    %1023 = vmatpush2.msra.mxu0 0.0
    %1024 = vmatprep.subr.mxu0 0.0
    %1025 = vmatpush2.msra.mxu0 0.0
    %1026 = vmatprep.subr.mxu0 0.0
    %1027 = vmatpush2.msra.mxu0 0.0
    %1028 = vmatprep.mubr.f32.mxu0 0.0
    %1029 = vmatmul.mubr.f32.gmra.mxu0 %v959
    %v1030 = vpop.f32.mrf.mxu0
    %v1031 = vadd.f32 %v957, %v1030
    %v1032 = vpop.f32.mrf.mxu0
    %1033 = vmatprep.mubr.f32.mxu0 0.0
    %1034 = vmatmul.mubr.f32.gmra.mxu0 %v962
    %v1035 = vpop.f32.mrf.mxu0
    %v1036 = vadd.f32 %v957, %v1035
    %v1037 = vpop.f32.mrf.mxu0
    %1038 = vdwg.mxu0
    %v1039 = vtanh.pop %v1031
    %v1040 = vtanh.pop %v1036
    %v1041 = vld [vmem:[#allocation2 + $0x18] sm:$0xff]
    %v1042 = vld [vmem:[#allocation2 + $0x48] sm:$0xff]
    %v1043 = vld [vmem:[#allocation2 + $0x78] sm:$0xff]
    %v1044 = vld [vmem:[#allocation2 + $0xa8] sm:$0xff]
    %v1045 = vlaneseq
    %v1046 = vshrl.u32 %v1045, 7
    %v1047 = vsub.s32 3, %v1046
    %v1048 = vrot.slane %v33, %v1047
    %v1050 = vsel %vm36, %v1039, 0
    %v1053 = vsel %vm36, %v1040, 0
    %1055 = vmatprep.subr.mxu0 0.0
    %1056 = vmatpush1.msra.mxu0 0.0
    %1057 = vmatprep.subr.mxu0 0.0
    %1058 = vmatpush1.msra.mxu0 0.0
    %1059 = vmatprep.subr.mxu0 0.0
    %1060 = vmatpush1.msra.mxu0 0.0
    %1061 = vmatprep.subr.mxu0 0.0
    %1062 = vmatpush1.msra.mxu0 0.0
    %1063 = vmatprep.subr.mxu0 0.0
    %1064 = vmatpush1.msra.mxu0 0.0
    %1065 = vmatprep.subr.mxu0 0.0
    %1066 = vmatpush1.msra.mxu0 0.0
    %1067 = vmatprep.subr.mxu0 0.0
    %1068 = vmatpush1.msra.mxu0 0.0
    %1069 = vmatprep.subr.mxu0 0.0
    %1070 = vmatpush1.msra.mxu0 0.0
    %1071 = vmatprep.subr.mxu0 0.0
    %1072 = vmatpush1.msra.mxu0 0.0
    %1073 = vmatprep.subr.mxu0 0.0
    %1074 = vmatpush1.msra.mxu0 0.0
    %1075 = vmatprep.subr.mxu0 0.0
    %1076 = vmatpush1.msra.mxu0 0.0
    %1077 = vmatprep.subr.mxu0 0.0
    %1078 = vmatpush1.msra.mxu0 0.0
    %1079 = vmatprep.subr.mxu0 0.0
    %1080 = vmatpush1.msra.mxu0 %v1044
    %1081 = vmatprep.subr.mxu0 0.0
    %1082 = vmatpush1.msra.mxu0 %v1043
    %1083 = vmatprep.subr.mxu0 0.0
    %1084 = vmatpush1.msra.mxu0 %v1042
    %1085 = vmatprep.subr.mxu0 0.0
    %1086 = vmatpush1.msra.mxu0 %v1041
    %1087 = vmatprep.subr.mxu0 0.0
    %1088 = vmatpush2.msra.mxu0 0.0
    %1089 = vmatprep.subr.mxu0 0.0
    %1090 = vmatpush2.msra.mxu0 0.0
    %1091 = vmatprep.subr.mxu0 0.0
    %1092 = vmatpush2.msra.mxu0 0.0
    %1093 = vmatprep.subr.mxu0 0.0
    %1094 = vmatpush2.msra.mxu0 0.0
    %1095 = vmatprep.subr.mxu0 0.0
    %1096 = vmatpush2.msra.mxu0 0.0
    %1097 = vmatprep.subr.mxu0 0.0
    %1098 = vmatpush2.msra.mxu0 0.0
    %1099 = vmatprep.subr.mxu0 0.0
    %1100 = vmatpush2.msra.mxu0 0.0
    %1101 = vmatprep.subr.mxu0 0.0
    %1102 = vmatpush2.msra.mxu0 0.0
    %1103 = vmatprep.subr.mxu0 0.0
    %1104 = vmatpush2.msra.mxu0 0.0
    %1105 = vmatprep.subr.mxu0 0.0
    %1106 = vmatpush2.msra.mxu0 0.0
    %1107 = vmatprep.subr.mxu0 0.0
    %1108 = vmatpush2.msra.mxu0 0.0
    %1109 = vmatprep.subr.mxu0 0.0
    %1110 = vmatpush2.msra.mxu0 0.0
    %1111 = vmatprep.subr.mxu0 0.0
    %1112 = vmatpush2.msra.mxu0 0.0
    %1113 = vmatprep.subr.mxu0 0.0
    %1114 = vmatpush2.msra.mxu0 0.0
    %1115 = vmatprep.subr.mxu0 0.0
    %1116 = vmatpush2.msra.mxu0 0.0
    %1117 = vmatprep.subr.mxu0 0.0
    %1118 = vmatpush2.msra.mxu0 0.0
    %1119 = vmatprep.mubr.f32.mxu0 0.0
    %1120 = vmatmul.mubr.f32.gmra.mxu0 %v1050
    %v1121 = vpop.f32.mrf.mxu0
    %v1122 = vadd.f32 %v1048, %v1121
    %v1123 = vpop.f32.mrf.mxu0
    %1124 = vmatprep.mubr.f32.mxu0 0.0
    %1125 = vmatmul.mubr.f32.gmra.mxu0 %v1053
    %v1126 = vpop.f32.mrf.mxu0
    %v1127 = vadd.f32 %v1048, %v1126
    %v1128 = vpop.f32.mrf.mxu0
    %1129 = vdwg.mxu0
    %1130 = vst [vmem:[%s4] sm:$0xff] %v1122
    %1131 = vst [vmem:[%s4 + $0x8] sm:$0xff] %v1127
    // Predicated region
    $region22: #{asc_forward.1} parent=1 // pred_check
      _
    $region23: #{asc_forward.1} parent=1 // pred_check_branch
      %1133 = sbr.rel (0) target = $region25
    $region24: #{asc_forward.1} parent=1 // pred_region
      _
    $region25: #{asc_forward.1} parent=1 // pred_fallthru
      _
    // Predicated region
    $region26: #{asc_forward.1} parent=1 // pred_check
      _
    $region27: #{asc_forward.1} parent=1 // pred_check_branch
      %1135 = sbr.rel (0) target = $region29
    $region28: #{asc_forward.1} parent=1 // pred_region
      _
    $region29: #{asc_forward.1} parent=1 // pred_fallthru
      _
    %1136 = vsyncpa [#allocation3], 1

</llo_original>
